<compile_context>
chip_gen: v6e
topology: v6e:2x2x1
jax: 0.10.0
libtpu: 0.0.40
codegen_flags: <defaults>
</compile_context>

<pallas_src>
import functools

import jax
import jax.numpy as jnp
from jax.experimental import pallas as pl
from jax.experimental.pallas import tpu as pltpu


# ----------------------------- Pallas kernel ------------------------------ #
def _make_fused_mlpconv_kernel(num_layers, tap_offsets, b_tile, l0):
    """Fused forward: KxK conv (shifted matmuls) + chained 1x1 convs + ReLU.

    Refs per grid step:
      x_ref : (b_tile, Cin, Lpad)  bf16  padded, spatially-flattened images
      per layer l: weight, bias (constant block index -> VMEM resident)
        layer 0 : w (kh*kw, Cout0, Cin) bf16 , b (Cout0, 1) f32
        layer >0: w (Cout, Cin)         bf16 , b (Cout, 1)  f32
      o_ref : (b_tile, Cout_last, l0) f32 with l0 = OH * Wp (lane-dense)
    """

    def _bias_relu(acc, b, is_last):
        y32 = jnp.maximum(acc + b, 0.0)           # f32 epilogue (v5e: no bf16 VALU)
        return y32 if is_last else y32.astype(jnp.bfloat16)   # bf16 inter-layer act

    def kernel(x_ref, *refs):
        o_ref = refs[-1]
        wb = refs[:-1]
        w0 = wb[0][...]                           # (kh*kw, Cout0, Cin), resident
        b0 = wb[1][...]                           # (Cout0, 1)
        rest = [(wb[2 * l][...], wb[2 * l + 1][...]) for l in range(1, num_layers)]

        # Static loop over the batch tile: the whole per-image chain stays in
        # VMEM/vregs; per-grid-step pipeline overhead is amortized over b_tile.
        for bb in range(b_tile):
            # Layer 0: KxK conv == sum over taps of statically shifted lane
            # slices fed to the MXU (in-kernel im2col, no duplicated patch slab).
            off0 = tap_offsets[0]
            acc = jnp.dot(w0[0], x_ref[bb, :, off0:off0 + l0],
                          preferred_element_type=jnp.float32)
            for t in range(1, len(tap_offsets)):
                off = tap_offsets[t]
                acc = acc + jnp.dot(w0[t], x_ref[bb, :, off:off + l0],
                                    preferred_element_type=jnp.float32)
            y = _bias_relu(acc, b0, num_layers == 1)

            # 1x1 conv layers: plain (Cout,Cin)@(Cin,L0) chain, bf16 in / f32 acc.
            for l, (w, b) in enumerate(rest, start=1):
                acc = jnp.dot(w, y, preferred_element_type=jnp.float32)
                y = _bias_relu(acc, b, l == num_layers - 1)

            o_ref[bb] = y.astype(o_ref.dtype)     # lane-dense (Cout_last, l0) store

    return kernel


# ------------------------------- JAX glue ---------------------------------- #
def _pick_batch_tile(n, per_image_block_bytes, vmem_budget_bytes):
    """>= 2 grid steps (v7x: 2 TCs) and double-buffered blocks within budget."""
    bt = max(1, n // 2)
    while bt > 1 and 2 * bt * per_image_block_bytes > vmem_budget_bytes:
        bt -= 1
    while n % bt:
        bt -= 1
    return bt


def init_mlpconv2d_params(key, in_channels, out_channels, kernel_size):
    """Deterministic init matching PyTorch Conv2d default bounds U(-1/sqrt(fan_in), ...)."""
    params = []
    chans = [in_channels] + list(out_channels)
    ksizes = [kernel_size] + [(1, 1)] * (len(out_channels) - 1)
    for (cin, cout), (kh, kw) in zip(zip(chans, chans[1:]), ksizes):
        fan_in = cin * kh * kw
        bound = 1.0 / float(fan_in) ** 0.5
        key, kw_key, kb_key = jax.random.split(key, 3)
        w = jax.random.uniform(kw_key, (cout, cin, kh, kw), jnp.float32, -bound, bound)
        b = jax.random.uniform(kb_key, (cout,), jnp.float32, -bound, bound)
        params.append((w, b))
    return params


def mlpconv2d_forward(x, params, kernel_size, stride, padding):
    """Forward pass of MLPConv2d. x: (N, C, H, W) f32 -> (N, Cout_last, OH, OW) f32."""
    N, C, H, W = x.shape
    kh, kw = (kernel_size, kernel_size) if isinstance(kernel_size, int) else kernel_size

    Hp, Wp = H + 2 * padding, W + 2 * padding
    # Stride-1 output grid; for stride>1 the 1x1 layers are elementwise per spatial
    # position, so the wrapper subsamples the final output instead.
    # TODO(synk): for large strides compute only the strided columns in-kernel.
    OH1, OW1 = Hp - kh + 1, Wp - kw + 1
    L0 = OH1 * Wp                                   # flat spatial extent (lane axis)
    Lpad = pl.cdiv(Hp * Wp + kw - 1, 128) * 128     # covers max tap shift, lane-aligned

    # Wrapper-side prep is just pad + flatten (~1x input bytes; no 9x patch slab).
    xp = jnp.pad(x, ((0, 0), (0, 0), (padding, padding), (padding, padding)))
    xflat = xp.reshape(N, C, Hp * Wp).astype(jnp.bfloat16)
    xflat = jnp.pad(xflat, ((0, 0), (0, 0), (0, Lpad - Hp * Wp)))

    # Static lane offsets of the kh*kw taps in the flattened padded image.
    tap_offsets = tuple(i * Wp + j for i in range(kh) for j in range(kw))

    c_last = params[-1][0].shape[0]

    # Batch tile: keep >= 2 parallel grid steps (v7x megacore) and stay well
    # under a v7x-safe VMEM budget (64 MiB physical there vs 128 MiB on v5e/v6e).
    per_img_bytes = C * Lpad * 2 + c_last * L0 * 4          # bf16 in + f32 out
    b_tile = _pick_batch_tile(N, per_img_bytes, 40 * 1024 * 1024)

    # Weights/biases in kernel layout; constant index maps keep them resident.
    # (At production widths: pipeline_mode=pl.Buffered(1) on these constant-index
    #  specs halves their VMEM; negligible at these sizes, so left at default.)
    flat_wb = []
    in_specs = [pl.BlockSpec((b_tile, C, Lpad), lambda b: (b, 0, 0))]

    w0, b0v = params[0]
    cout0 = w0.shape[0]
    w0m = jnp.transpose(w0, (2, 3, 0, 1)).reshape(kh * kw, cout0, C).astype(jnp.bfloat16)
    b0m = b0v.reshape(cout0, 1).astype(jnp.float32)
    flat_wb += [w0m, b0m]
    in_specs += [pl.BlockSpec(w0m.shape, lambda b: (0, 0, 0)),
                 pl.BlockSpec(b0m.shape, lambda b: (0, 0))]

    for w, bvec in params[1:]:
        cout = w.shape[0]
        wm = w.reshape(cout, -1).astype(jnp.bfloat16)       # (Cout, Cin) 1x1 conv
        bm = bvec.reshape(cout, 1).astype(jnp.float32)
        flat_wb += [wm, bm]
        in_specs += [pl.BlockSpec(wm.shape, lambda b: (0, 0)),
                     pl.BlockSpec(bm.shape, lambda b: (0, 0))]

    out = pl.pallas_call(
        _make_fused_mlpconv_kernel(len(params), tap_offsets, b_tile, L0),
        out_shape=jax.ShapeDtypeStruct((N, c_last, L0), jnp.float32),
        grid_spec=pltpu.PrefetchScalarGridSpec(
            num_scalar_prefetch=0,
            grid=(N // b_tile,),
            in_specs=in_specs,
            out_specs=pl.BlockSpec((b_tile, c_last, L0), lambda b: (b, 0, 0)),
        ),
        compiler_params=pltpu.CompilerParams(
            dimension_semantics=("parallel",),              # shard batch over TCs
            vmem_limit_bytes=48 * 1024 * 1024),             # <= v7x 64 MiB physical
    )(xflat, *flat_wb)

    # (N, c_last, OH1*Wp) -> NCHW; drop the Wp-OW garbage columns; apply stride.
    out = out.reshape(N, c_last, OH1, Wp)[:, :, :, :OW1]
    if stride > 1:
        out = out[:, :, ::stride, ::stride]
    return out


def _reference_forward(x, params, stride, padding):
    """Pure-JAX/XLA reference (f32) of the same module semantics."""
    y = x
    for idx, (w, b) in enumerate(params):
        st = stride if idx == 0 else 1
        pad = padding if idx == 0 else 0
        y = jax.lax.conv_general_dilated(
            y, w, window_strides=(st, st), padding=[(pad, pad), (pad, pad)],
            dimension_numbers=("NCHW", "OIHW", "NCHW"))
        y = jnp.maximum(y + b.reshape(1, -1, 1, 1), 0.0)
    return y


if __name__ == "__main__":
    key = jax.random.PRNGKey(0)
    k_x, k_p = jax.random.split(key)

    # Small, module-consistent shapes.
    batch, in_channels, spatial = 2, 4, 16
    out_channels = (8, 8, 16)
    kernel_size = (3, 3)
    stride, padding = 1, 1

    x = jax.random.normal(k_x, (batch, in_channels, spatial, spatial), jnp.float32)
    params = init_mlpconv2d_params(k_p, in_channels, out_channels, kernel_size)

    fwd = jax.jit(functools.partial(
        mlpconv2d_forward, kernel_size=kernel_size, stride=stride, padding=padding))
    out = fwd(x, params)
    jax.block_until_ready(out)

    expected_shape = (batch, out_channels[-1], spatial, spatial)
    assert out.shape == expected_shape, (out.shape, expected_shape)
    assert bool(jnp.all(out >= 0.0))  # ReLU applied to final layer per reference code

    # Loose tolerance vs. f32 XLA reference (kernel uses bf16 matmul inputs).
    ref = _reference_forward(x, params, stride, padding)
    rel_err = float(jnp.max(jnp.abs(out - ref)) / (jnp.max(jnp.abs(ref)) + 1e-6))
    assert rel_err < 5e-2, rel_err

    print("KERNEL_OK")
</pallas_src>

<mosaic_0001>
module attributes {stable_mosaic.version = 11 : i64} {
  func.func @kernel(%arg0: i32, %arg1: memref<1x4x384xbf16, #tpu.memory_space<vmem>>, %arg2: memref<9x8x4xbf16, #tpu.memory_space<vmem>>, %arg3: memref<8x1xf32, #tpu.memory_space<vmem>>, %arg4: memref<8x8xbf16, #tpu.memory_space<vmem>>, %arg5: memref<8x1xf32, #tpu.memory_space<vmem>>, %arg6: memref<16x8xbf16, #tpu.memory_space<vmem>>, %arg7: memref<16x1xf32, #tpu.memory_space<vmem>>, %arg8: memref<1x16x288xf32, #tpu.memory_space<vmem>>) attributes {dimension_semantics = [#tpu.dimension_semantics<parallel>], iteration_bounds = array<i64: 2>, scalar_prefetch = 0 : i64, scratch_operands = 0 : i64, tpu.core_type = #tpu.core_type<tc>, window_params = [{transform_indices = @transform_0, window_bounds = array<i64: 1, 4, 384>}, {pipeline_mode = #tpu.pipeline_mode<synchronous>, transform_indices = @transform_1, window_bounds = array<i64: 9, 8, 4>}, {pipeline_mode = #tpu.pipeline_mode<synchronous>, transform_indices = @transform_2, window_bounds = array<i64: 8, 1>}, {pipeline_mode = #tpu.pipeline_mode<synchronous>, transform_indices = @transform_3, window_bounds = array<i64: 8, 8>}, {pipeline_mode = #tpu.pipeline_mode<synchronous>, transform_indices = @transform_4, window_bounds = array<i64: 8, 1>}, {pipeline_mode = #tpu.pipeline_mode<synchronous>, transform_indices = @transform_5, window_bounds = array<i64: 16, 8>}, {pipeline_mode = #tpu.pipeline_mode<synchronous>, transform_indices = @transform_6, window_bounds = array<i64: 16, 1>}, {transform_indices = @transform_7, window_bounds = array<i64: 1, 16, 288>}]} {
    %c0 = arith.constant 0 : index
    %c0_0 = arith.constant 0 : index
    %c0_1 = arith.constant 0 : index
    %0 = vector.load %arg2[%c0, %c0_0, %c0_1] : memref<9x8x4xbf16, #tpu.memory_space<vmem>>, vector<9x8x4xbf16>
    %c0_2 = arith.constant 0 : index
    %c0_3 = arith.constant 0 : index
    %1 = vector.load %arg3[%c0_2, %c0_3] : memref<8x1xf32, #tpu.memory_space<vmem>>, vector<8x1xf32>
    %c0_4 = arith.constant 0 : index
    %c0_5 = arith.constant 0 : index
    %2 = vector.load %arg4[%c0_4, %c0_5] : memref<8x8xbf16, #tpu.memory_space<vmem>>, vector<8x8xbf16>
    %c0_6 = arith.constant 0 : index
    %c0_7 = arith.constant 0 : index
    %3 = vector.load %arg5[%c0_6, %c0_7] : memref<8x1xf32, #tpu.memory_space<vmem>>, vector<8x1xf32>
    %c0_8 = arith.constant 0 : index
    %c0_9 = arith.constant 0 : index
    %4 = vector.load %arg6[%c0_8, %c0_9] : memref<16x8xbf16, #tpu.memory_space<vmem>>, vector<16x8xbf16>
    %c0_10 = arith.constant 0 : index
    %c0_11 = arith.constant 0 : index
    %5 = vector.load %arg7[%c0_10, %c0_11] : memref<16x1xf32, #tpu.memory_space<vmem>>, vector<16x1xf32>
    %6 = vector.extract_strided_slice %0 {offsets = [0, 0, 0], sizes = [1, 8, 4], strides = [1, 1, 1]} : vector<9x8x4xbf16> to vector<1x8x4xbf16>
    %7 = vector.shape_cast %6 : vector<1x8x4xbf16> to vector<8x4xbf16>
    %c0_12 = arith.constant 0 : index
    %c0_13 = arith.constant 0 : index
    %c0_14 = arith.constant 0 : index
    %8 = vector.load %arg1[%c0_12, %c0_13, %c0_14] : memref<1x4x384xbf16, #tpu.memory_space<vmem>>, vector<1x4x288xbf16>
    %9 = vector.shape_cast %8 : vector<1x4x288xbf16> to vector<4x288xbf16>
    %cst = arith.constant dense<0.000000e+00> : vector<8x288xf32>
    %10 = tpu.matmul %7, %9, %cst {dimension_numbers = #tpu.dot_dimension_numbers<[1], [0], [0], [1], [0, 0, 1, 1], [], []>} : vector<8x4xbf16>, vector<4x288xbf16>, vector<8x288xf32> -> vector<8x288xf32>
    %11 = vector.extract_strided_slice %0 {offsets = [1, 0, 0], sizes = [1, 8, 4], strides = [1, 1, 1]} : vector<9x8x4xbf16> to vector<1x8x4xbf16>
    %12 = vector.shape_cast %11 : vector<1x8x4xbf16> to vector<8x4xbf16>
    %c0_15 = arith.constant 0 : index
    %c0_16 = arith.constant 0 : index
    %c1 = arith.constant 1 : index
    %13 = vector.load %arg1[%c0_15, %c0_16, %c1] : memref<1x4x384xbf16, #tpu.memory_space<vmem>>, vector<1x4x288xbf16>
    %14 = vector.shape_cast %13 : vector<1x4x288xbf16> to vector<4x288xbf16>
    %cst_17 = arith.constant dense<0.000000e+00> : vector<8x288xf32>
    %15 = tpu.matmul %12, %14, %cst_17 {dimension_numbers = #tpu.dot_dimension_numbers<[1], [0], [0], [1], [0, 0, 1, 1], [], []>} : vector<8x4xbf16>, vector<4x288xbf16>, vector<8x288xf32> -> vector<8x288xf32>
    %16 = arith.addf %10, %15 : vector<8x288xf32>
    %17 = vector.extract_strided_slice %0 {offsets = [2, 0, 0], sizes = [1, 8, 4], strides = [1, 1, 1]} : vector<9x8x4xbf16> to vector<1x8x4xbf16>
    %18 = vector.shape_cast %17 : vector<1x8x4xbf16> to vector<8x4xbf16>
    %c0_18 = arith.constant 0 : index
    %c0_19 = arith.constant 0 : index
    %c2 = arith.constant 2 : index
    %19 = vector.load %arg1[%c0_18, %c0_19, %c2] : memref<1x4x384xbf16, #tpu.memory_space<vmem>>, vector<1x4x288xbf16>
    %20 = vector.shape_cast %19 : vector<1x4x288xbf16> to vector<4x288xbf16>
    %cst_20 = arith.constant dense<0.000000e+00> : vector<8x288xf32>
    %21 = tpu.matmul %18, %20, %cst_20 {dimension_numbers = #tpu.dot_dimension_numbers<[1], [0], [0], [1], [0, 0, 1, 1], [], []>} : vector<8x4xbf16>, vector<4x288xbf16>, vector<8x288xf32> -> vector<8x288xf32>
    %22 = arith.addf %16, %21 : vector<8x288xf32>
    %23 = vector.extract_strided_slice %0 {offsets = [3, 0, 0], sizes = [1, 8, 4], strides = [1, 1, 1]} : vector<9x8x4xbf16> to vector<1x8x4xbf16>
    %24 = vector.shape_cast %23 : vector<1x8x4xbf16> to vector<8x4xbf16>
    %c0_21 = arith.constant 0 : index
    %c0_22 = arith.constant 0 : index
    %c18 = arith.constant 18 : index
    %25 = vector.load %arg1[%c0_21, %c0_22, %c18] : memref<1x4x384xbf16, #tpu.memory_space<vmem>>, vector<1x4x288xbf16>
    %26 = vector.shape_cast %25 : vector<1x4x288xbf16> to vector<4x288xbf16>
    %cst_23 = arith.constant dense<0.000000e+00> : vector<8x288xf32>
    %27 = tpu.matmul %24, %26, %cst_23 {dimension_numbers = #tpu.dot_dimension_numbers<[1], [0], [0], [1], [0, 0, 1, 1], [], []>} : vector<8x4xbf16>, vector<4x288xbf16>, vector<8x288xf32> -> vector<8x288xf32>
    %28 = arith.addf %22, %27 : vector<8x288xf32>
    %29 = vector.extract_strided_slice %0 {offsets = [4, 0, 0], sizes = [1, 8, 4], strides = [1, 1, 1]} : vector<9x8x4xbf16> to vector<1x8x4xbf16>
    %30 = vector.shape_cast %29 : vector<1x8x4xbf16> to vector<8x4xbf16>
    %c0_24 = arith.constant 0 : index
    %c0_25 = arith.constant 0 : index
    %c19 = arith.constant 19 : index
    %31 = vector.load %arg1[%c0_24, %c0_25, %c19] : memref<1x4x384xbf16, #tpu.memory_space<vmem>>, vector<1x4x288xbf16>
    %32 = vector.shape_cast %31 : vector<1x4x288xbf16> to vector<4x288xbf16>
    %cst_26 = arith.constant dense<0.000000e+00> : vector<8x288xf32>
    %33 = tpu.matmul %30, %32, %cst_26 {dimension_numbers = #tpu.dot_dimension_numbers<[1], [0], [0], [1], [0, 0, 1, 1], [], []>} : vector<8x4xbf16>, vector<4x288xbf16>, vector<8x288xf32> -> vector<8x288xf32>
    %34 = arith.addf %28, %33 : vector<8x288xf32>
    %35 = vector.extract_strided_slice %0 {offsets = [5, 0, 0], sizes = [1, 8, 4], strides = [1, 1, 1]} : vector<9x8x4xbf16> to vector<1x8x4xbf16>
    %36 = vector.shape_cast %35 : vector<1x8x4xbf16> to vector<8x4xbf16>
    %c0_27 = arith.constant 0 : index
    %c0_28 = arith.constant 0 : index
    %c20 = arith.constant 20 : index
    %37 = vector.load %arg1[%c0_27, %c0_28, %c20] : memref<1x4x384xbf16, #tpu.memory_space<vmem>>, vector<1x4x288xbf16>
    %38 = vector.shape_cast %37 : vector<1x4x288xbf16> to vector<4x288xbf16>
    %cst_29 = arith.constant dense<0.000000e+00> : vector<8x288xf32>
    %39 = tpu.matmul %36, %38, %cst_29 {dimension_numbers = #tpu.dot_dimension_numbers<[1], [0], [0], [1], [0, 0, 1, 1], [], []>} : vector<8x4xbf16>, vector<4x288xbf16>, vector<8x288xf32> -> vector<8x288xf32>
    %40 = arith.addf %34, %39 : vector<8x288xf32>
    %41 = vector.extract_strided_slice %0 {offsets = [6, 0, 0], sizes = [1, 8, 4], strides = [1, 1, 1]} : vector<9x8x4xbf16> to vector<1x8x4xbf16>
    %42 = vector.shape_cast %41 : vector<1x8x4xbf16> to vector<8x4xbf16>
    %c0_30 = arith.constant 0 : index
    %c0_31 = arith.constant 0 : index
    %c36 = arith.constant 36 : index
    %43 = vector.load %arg1[%c0_30, %c0_31, %c36] : memref<1x4x384xbf16, #tpu.memory_space<vmem>>, vector<1x4x288xbf16>
    %44 = vector.shape_cast %43 : vector<1x4x288xbf16> to vector<4x288xbf16>
    %cst_32 = arith.constant dense<0.000000e+00> : vector<8x288xf32>
    %45 = tpu.matmul %42, %44, %cst_32 {dimension_numbers = #tpu.dot_dimension_numbers<[1], [0], [0], [1], [0, 0, 1, 1], [], []>} : vector<8x4xbf16>, vector<4x288xbf16>, vector<8x288xf32> -> vector<8x288xf32>
    %46 = arith.addf %40, %45 : vector<8x288xf32>
    %47 = vector.extract_strided_slice %0 {offsets = [7, 0, 0], sizes = [1, 8, 4], strides = [1, 1, 1]} : vector<9x8x4xbf16> to vector<1x8x4xbf16>
    %48 = vector.shape_cast %47 : vector<1x8x4xbf16> to vector<8x4xbf16>
    %c0_33 = arith.constant 0 : index
    %c0_34 = arith.constant 0 : index
    %c37 = arith.constant 37 : index
    %49 = vector.load %arg1[%c0_33, %c0_34, %c37] : memref<1x4x384xbf16, #tpu.memory_space<vmem>>, vector<1x4x288xbf16>
    %50 = vector.shape_cast %49 : vector<1x4x288xbf16> to vector<4x288xbf16>
    %cst_35 = arith.constant dense<0.000000e+00> : vector<8x288xf32>
    %51 = tpu.matmul %48, %50, %cst_35 {dimension_numbers = #tpu.dot_dimension_numbers<[1], [0], [0], [1], [0, 0, 1, 1], [], []>} : vector<8x4xbf16>, vector<4x288xbf16>, vector<8x288xf32> -> vector<8x288xf32>
    %52 = arith.addf %46, %51 : vector<8x288xf32>
    %53 = vector.extract_strided_slice %0 {offsets = [8, 0, 0], sizes = [1, 8, 4], strides = [1, 1, 1]} : vector<9x8x4xbf16> to vector<1x8x4xbf16>
    %54 = vector.shape_cast %53 : vector<1x8x4xbf16> to vector<8x4xbf16>
    %c0_36 = arith.constant 0 : index
    %c0_37 = arith.constant 0 : index
    %c38 = arith.constant 38 : index
    %55 = vector.load %arg1[%c0_36, %c0_37, %c38] : memref<1x4x384xbf16, #tpu.memory_space<vmem>>, vector<1x4x288xbf16>
    %56 = vector.shape_cast %55 : vector<1x4x288xbf16> to vector<4x288xbf16>
    %cst_38 = arith.constant dense<0.000000e+00> : vector<8x288xf32>
    %57 = tpu.matmul %54, %56, %cst_38 {dimension_numbers = #tpu.dot_dimension_numbers<[1], [0], [0], [1], [0, 0, 1, 1], [], []>} : vector<8x4xbf16>, vector<4x288xbf16>, vector<8x288xf32> -> vector<8x288xf32>
    %58 = arith.addf %52, %57 : vector<8x288xf32>
    %59 = vector.broadcast %1 : vector<8x1xf32> to vector<8x288xf32>
    %60 = arith.addf %58, %59 : vector<8x288xf32>
    %cst_39 = arith.constant 0.000000e+00 : f32
    %61 = vector.broadcast %cst_39 : f32 to vector<8x288xf32>
    %62 = arith.maximumf %60, %61 : vector<8x288xf32>
    %63 = arith.truncf %62 : vector<8x288xf32> to vector<8x288xbf16>
    %cst_40 = arith.constant dense<0.000000e+00> : vector<8x288xf32>
    %64 = tpu.matmul %2, %63, %cst_40 {dimension_numbers = #tpu.dot_dimension_numbers<[1], [0], [0], [1], [0, 0, 1, 1], [], []>} : vector<8x8xbf16>, vector<8x288xbf16>, vector<8x288xf32> -> vector<8x288xf32>
    %65 = vector.broadcast %3 : vector<8x1xf32> to vector<8x288xf32>
    %66 = arith.addf %64, %65 : vector<8x288xf32>
    %cst_41 = arith.constant 0.000000e+00 : f32
    %67 = vector.broadcast %cst_41 : f32 to vector<8x288xf32>
    %68 = arith.maximumf %66, %67 : vector<8x288xf32>
    %69 = arith.truncf %68 : vector<8x288xf32> to vector<8x288xbf16>
    %cst_42 = arith.constant dense<0.000000e+00> : vector<16x288xf32>
    %70 = tpu.matmul %4, %69, %cst_42 {dimension_numbers = #tpu.dot_dimension_numbers<[1], [0], [0], [1], [0, 0, 1, 1], [], []>} : vector<16x8xbf16>, vector<8x288xbf16>, vector<16x288xf32> -> vector<16x288xf32>
    %71 = vector.broadcast %5 : vector<16x1xf32> to vector<16x288xf32>
    %72 = arith.addf %70, %71 : vector<16x288xf32>
    %cst_43 = arith.constant 0.000000e+00 : f32
    %73 = vector.broadcast %cst_43 : f32 to vector<16x288xf32>
    %74 = arith.maximumf %72, %73 : vector<16x288xf32>
    %c0_44 = arith.constant 0 : index
    %c0_45 = arith.constant 0 : index
    %c0_46 = arith.constant 0 : index
    %75 = vector.load %arg8[%c0_44, %c0_45, %c0_46] : memref<1x16x288xf32, #tpu.memory_space<vmem>>, vector<1x16x288xf32>
    %76 = vector.shape_cast %75 : vector<1x16x288xf32> to vector<16x288xf32>
    %77 = vector.shape_cast %74 : vector<16x288xf32> to vector<1x16x288xf32>
    tpu.vector_store %arg8[%c0_44, %c0_45, %c0_46], %77 {strides = array<i32>} : memref<1x16x288xf32, #tpu.memory_space<vmem>>, vector<1x16x288xf32>,
    return
  }
  func.func @transform_0(%arg0: i32) -> (i32, i32, i32) {
    %c0_i32 = arith.constant 0 : i32
    %c0_i32_0 = arith.constant 0 : i32
    %c0_i32_1 = arith.constant 0 : i32
    return %arg0, %c0_i32, %c0_i32_0 : i32, i32, i32
  }
  func.func @transform_1(%arg0: i32) -> (i32, i32, i32) {
    %c0_i32 = arith.constant 0 : i32
    %c0_i32_0 = arith.constant 0 : i32
    %c0_i32_1 = arith.constant 0 : i32
    %c0_i32_2 = arith.constant 0 : i32
    return %c0_i32, %c0_i32_0, %c0_i32_1 : i32, i32, i32
  }
  func.func @transform_2(%arg0: i32) -> (i32, i32) {
    %c0_i32 = arith.constant 0 : i32
    %c0_i32_0 = arith.constant 0 : i32
    %c0_i32_1 = arith.constant 0 : i32
    return %c0_i32, %c0_i32_0 : i32, i32
  }
  func.func @transform_3(%arg0: i32) -> (i32, i32) {
    %c0_i32 = arith.constant 0 : i32
    %c0_i32_0 = arith.constant 0 : i32
    %c0_i32_1 = arith.constant 0 : i32
    return %c0_i32, %c0_i32_0 : i32, i32
  }
  func.func @transform_4(%arg0: i32) -> (i32, i32) {
    %c0_i32 = arith.constant 0 : i32
    %c0_i32_0 = arith.constant 0 : i32
    %c0_i32_1 = arith.constant 0 : i32
    return %c0_i32, %c0_i32_0 : i32, i32
  }
  func.func @transform_5(%arg0: i32) -> (i32, i32) {
    %c0_i32 = arith.constant 0 : i32
    %c0_i32_0 = arith.constant 0 : i32
    %c0_i32_1 = arith.constant 0 : i32
    return %c0_i32, %c0_i32_0 : i32, i32
  }
  func.func @transform_6(%arg0: i32) -> (i32, i32) {
    %c0_i32 = arith.constant 0 : i32
    %c0_i32_0 = arith.constant 0 : i32
    %c0_i32_1 = arith.constant 0 : i32
    return %c0_i32, %c0_i32_0 : i32, i32
  }
  func.func @transform_7(%arg0: i32) -> (i32, i32, i32) {
    %c0_i32 = arith.constant 0 : i32
    %c0_i32_0 = arith.constant 0 : i32
    %c0_i32_1 = arith.constant 0 : i32
    return %arg0, %c0_i32, %c0_i32_0 : i32, i32, i32
  }
}

</mosaic_0001>

<llo_original>
// kernel: mlpconv2d_forward.1
$region0: #{mlpconv2d_forward.1}
  #allocation0 [shape = 'u32[]', space=smem, size = 0x4, offset = 0x4, fixed_abs, tag = 'smem constant byte address 0x4 - core index']
  #allocation1 [shape = 'u32[144,128]{1,0:T(1,128)}', space=vmem, size = 0x12000, scoped, tag = 'internal scratch']
  %s0 = inlined_call_operand.vmem [shape: bf16[2,4,384], index: 0, kind: input, shape index: {}]
  %s1 = inlined_call_operand.vmem [shape: bf16[9,8,4], index: 1, kind: input, shape index: {}]
  %s2 = inlined_call_operand.vmem [shape: f32[8,1], index: 2, kind: input, shape index: {}]
  %s3 = inlined_call_operand.vmem [shape: bf16[8,8], index: 3, kind: input, shape index: {}]
  %s4 = inlined_call_operand.vmem [shape: f32[8,1], index: 4, kind: input, shape index: {}]
  %s5 = inlined_call_operand.vmem [shape: bf16[16,8], index: 5, kind: input, shape index: {}]
  %s6 = inlined_call_operand.vmem [shape: f32[16,1], index: 6, kind: input, shape index: {}]
  %s7 = inlined_call_operand.vmem [shape: f32[2,16,288], index: 7, kind: output, shape index: {}]
  %s8 = sld [smem:[#allocation0]]
  $region61: #{mlpconv2d_forward.1} parent=0
    _
  %s10 = ssub.s32 1, %s8
  %s11 = scalar_select 0, %s10, %s8
  loop: start=0, step=1, limit=4
  $region2: #{mlpconv2d_forward.1} parent=0 // loop_pre_header
    _
  $region3: #{mlpconv2d_forward.1} parent=0 // loop_header
    %s13 = sphi 0, %s17
    %p14 = scmp.ge.s32.totalorder %s13, 4
    %s23 = sphi 0, %s25
    %s26 = sphi 0, %s23
    %s27 = sphi 0, %s26
    %s43 = sphi 0, %s27
    %s47 = sphi 0, %s47
    %s49 = sphi 0, %s47
    %s50 = sphi 0, %s49
    %s64 = sphi 0, %s50
    %s68 = sphi 0, %s68
    %s70 = sphi 0, %s68
    %s71 = sphi 0, %s70
    %s85 = sphi 0, %s71
    %s89 = sphi 0, %s89
    %s91 = sphi 0, %s89
    %s92 = sphi 0, %s91
    %s106 = sphi 0, %s92
    %s110 = sphi 0, %s110
    %s112 = sphi 0, %s110
    %s113 = sphi 0, %s112
    %s127 = sphi 0, %s113
    %s131 = sphi 0, %s131
    %s133 = sphi 0, %s131
    %s134 = sphi 0, %s133
    %s148 = sphi 0, %s134
    %s152 = sphi 0, %s152
    %s154 = sphi 0, %s152
    %s155 = sphi 0, %s154
    %s169 = sphi 0, %s155
    %s175 = sphi 0, %s177
    %s178 = sphi 0, %s175
    %s179 = sphi 0, %s178
    %s195 = sphi 0, %s179
  $region4: #{mlpconv2d_forward.1} parent=0 // loop_header_branch
    %16 = sbr.rel (%p14) target = $region8
  $region5: #{mlpconv2d_forward.1} parent=0 // loop_body
    %s18 = ssub.s32 %s13, 1
    %s19 = ssub.s32 %s13, 2
    %s20 = sadd.s32 %s13, 1
    %s21 = ssub.s32 %s13, %s20
    %p22 = scmp.eq.s32.totalorder %s21, 0
    %s24 = sadd.s32 %s23, 1
    %s25 = scalar_select %p22, %s23, %s24
    %p28 = pneg %p22
    %p29 = scmp.eq.s32.totalorder %s13, 1
    %p30 = por %p28, %p29
    %p31 = scmp.ne.s32.totalorder %s23, %s26
    %p32 = scmp.eq.s32.totalorder %s13, 0
    %p33 = por %p31, %p32
    %p34 = scmp.ne.s32.totalorder %s23, %s26
    %p35 = scmp.eq.s32.totalorder %s18, 1
    %p36 = por %p34, %p35
    %p37 = scmp.ne.s32.totalorder %s26, %s27
    %p38 = scmp.eq.s32.totalorder %s18, 0
    %p39 = por %p37, %p38
    %p40 = scmp.ne.s32.totalorder %s26, %s27
    %p41 = scmp.eq.s32.totalorder %s19, 1
    %p42 = por %p40, %p41
    %p44 = scmp.ne.s32.totalorder %s27, %s43
    %p45 = scmp.eq.s32.totalorder %s19, 0
    %p46 = por %p44, %p45
    %s48 = sadd.s32 %s47, 1
    %p51 = scmp.eq.s32.totalorder %s13, 1
    %p52 = scmp.ne.s32.totalorder %s47, %s49
    %p53 = scmp.eq.s32.totalorder %s13, 0
    %p54 = por %p52, %p53
    %p55 = scmp.ne.s32.totalorder %s47, %s49
    %p56 = scmp.eq.s32.totalorder %s18, 1
    %p57 = por %p55, %p56
    %p58 = scmp.ne.s32.totalorder %s49, %s50
    %p59 = scmp.eq.s32.totalorder %s18, 0
    %p60 = por %p58, %p59
    %p61 = scmp.ne.s32.totalorder %s49, %s50
    %p62 = scmp.eq.s32.totalorder %s19, 1
    %p63 = por %p61, %p62
    %p65 = scmp.ne.s32.totalorder %s50, %s64
    %p66 = scmp.eq.s32.totalorder %s19, 0
    %p67 = por %p65, %p66
    %s69 = sadd.s32 %s68, 1
    %p72 = scmp.eq.s32.totalorder %s13, 1
    %p73 = scmp.ne.s32.totalorder %s68, %s70
    %p74 = scmp.eq.s32.totalorder %s13, 0
    %p75 = por %p73, %p74
    %p76 = scmp.ne.s32.totalorder %s68, %s70
    %p77 = scmp.eq.s32.totalorder %s18, 1
    %p78 = por %p76, %p77
    %p79 = scmp.ne.s32.totalorder %s70, %s71
    %p80 = scmp.eq.s32.totalorder %s18, 0
    %p81 = por %p79, %p80
    %p82 = scmp.ne.s32.totalorder %s70, %s71
    %p83 = scmp.eq.s32.totalorder %s19, 1
    %p84 = por %p82, %p83
    %p86 = scmp.ne.s32.totalorder %s71, %s85
    %p87 = scmp.eq.s32.totalorder %s19, 0
    %p88 = por %p86, %p87
    %s90 = sadd.s32 %s89, 1
    %p93 = scmp.eq.s32.totalorder %s13, 1
    %p94 = scmp.ne.s32.totalorder %s89, %s91
    %p95 = scmp.eq.s32.totalorder %s13, 0
    %p96 = por %p94, %p95
    %p97 = scmp.ne.s32.totalorder %s89, %s91
    %p98 = scmp.eq.s32.totalorder %s18, 1
    %p99 = por %p97, %p98
    %p100 = scmp.ne.s32.totalorder %s91, %s92
    %p101 = scmp.eq.s32.totalorder %s18, 0
    %p102 = por %p100, %p101
    %p103 = scmp.ne.s32.totalorder %s91, %s92
    %p104 = scmp.eq.s32.totalorder %s19, 1
    %p105 = por %p103, %p104
    %p107 = scmp.ne.s32.totalorder %s92, %s106
    %p108 = scmp.eq.s32.totalorder %s19, 0
    %p109 = por %p107, %p108
    %s111 = sadd.s32 %s110, 1
    %p114 = scmp.eq.s32.totalorder %s13, 1
    %p115 = scmp.ne.s32.totalorder %s110, %s112
    %p116 = scmp.eq.s32.totalorder %s13, 0
    %p117 = por %p115, %p116
    %p118 = scmp.ne.s32.totalorder %s110, %s112
    %p119 = scmp.eq.s32.totalorder %s18, 1
    %p120 = por %p118, %p119
    %p121 = scmp.ne.s32.totalorder %s112, %s113
    %p122 = scmp.eq.s32.totalorder %s18, 0
    %p123 = por %p121, %p122
    %p124 = scmp.ne.s32.totalorder %s112, %s113
    %p125 = scmp.eq.s32.totalorder %s19, 1
    %p126 = por %p124, %p125
    %p128 = scmp.ne.s32.totalorder %s113, %s127
    %p129 = scmp.eq.s32.totalorder %s19, 0
    %p130 = por %p128, %p129
    %s132 = sadd.s32 %s131, 1
    %p135 = scmp.eq.s32.totalorder %s13, 1
    %p136 = scmp.ne.s32.totalorder %s131, %s133
    %p137 = scmp.eq.s32.totalorder %s13, 0
    %p138 = por %p136, %p137
    %p139 = scmp.ne.s32.totalorder %s131, %s133
    %p140 = scmp.eq.s32.totalorder %s18, 1
    %p141 = por %p139, %p140
    %p142 = scmp.ne.s32.totalorder %s133, %s134
    %p143 = scmp.eq.s32.totalorder %s18, 0
    %p144 = por %p142, %p143
    %p145 = scmp.ne.s32.totalorder %s133, %s134
    %p146 = scmp.eq.s32.totalorder %s19, 1
    %p147 = por %p145, %p146
    %p149 = scmp.ne.s32.totalorder %s134, %s148
    %p150 = scmp.eq.s32.totalorder %s19, 0
    %p151 = por %p149, %p150
    %s153 = sadd.s32 %s152, 1
    %p156 = scmp.eq.s32.totalorder %s13, 1
    %p157 = scmp.ne.s32.totalorder %s152, %s154
    %p158 = scmp.eq.s32.totalorder %s13, 0
    %p159 = por %p157, %p158
    %p160 = scmp.ne.s32.totalorder %s152, %s154
    %p161 = scmp.eq.s32.totalorder %s18, 1
    %p162 = por %p160, %p161
    %p163 = scmp.ne.s32.totalorder %s154, %s155
    %p164 = scmp.eq.s32.totalorder %s18, 0
    %p165 = por %p163, %p164
    %p166 = scmp.ne.s32.totalorder %s154, %s155
    %p167 = scmp.eq.s32.totalorder %s19, 1
    %p168 = por %p166, %p167
    %p170 = scmp.ne.s32.totalorder %s155, %s169
    %p171 = scmp.eq.s32.totalorder %s19, 0
    %p172 = por %p170, %p171
    %s173 = ssub.s32 %s13, %s20
    %p174 = scmp.eq.s32.totalorder %s173, 0
    %s176 = sadd.s32 %s175, 1
    %s177 = scalar_select %p174, %s175, %s176
    %p180 = pneg %p174
    %p181 = scmp.eq.s32.totalorder %s13, 1
    %p182 = por %p180, %p181
    %p183 = scmp.ne.s32.totalorder %s175, %s178
    %p184 = scmp.eq.s32.totalorder %s13, 0
    %p185 = por %p183, %p184
    %p186 = scmp.ne.s32.totalorder %s175, %s178
    %p187 = scmp.eq.s32.totalorder %s18, 1
    %p188 = por %p186, %p187
    %p189 = scmp.ne.s32.totalorder %s178, %s179
    %p190 = scmp.eq.s32.totalorder %s18, 0
    %p191 = por %p189, %p190
    %p192 = scmp.ne.s32.totalorder %s178, %s179
    %p193 = scmp.eq.s32.totalorder %s19, 1
    %p194 = por %p192, %p193
    %p196 = scmp.ne.s32.totalorder %s179, %s195
    %p197 = scmp.eq.s32.totalorder %s19, 0
    %p198 = por %p196, %p197
    %p199 = scmp.le.s32.totalorder 1, %s13
    %p200 = scmp.lt.s32.totalorder %s13, 3
    %p201 = pnand %p199, %p200
    %p202 = pneg %p201
    // Predicated region
    $region9: #{mlpconv2d_forward.1} parent=5 // pred_check
      _
    $region10: #{mlpconv2d_forward.1} parent=5 // pred_check_branch
      %204 = sbr.rel (%p201) target = $region12
    $region11: #{mlpconv2d_forward.1} parent=5 // pred_region
      %s205 = ssub.s32 %s13, 1
      // Predicated region
      $region13: #{mlpconv2d_forward.1} parent=11 // pred_check
        %p206 = pneg %p60
      $region14: #{mlpconv2d_forward.1} parent=11 // pred_check_branch
        %208 = sbr.rel (%p206) target = $region16
      $region15: #{mlpconv2d_forward.1} parent=11 // pred_region
        _
      $region16: #{mlpconv2d_forward.1} parent=11 // pred_fallthru
        _
      // Predicated region
      $region17: #{mlpconv2d_forward.1} parent=11 // pred_check
        %p209 = pneg %p81
      $region18: #{mlpconv2d_forward.1} parent=11 // pred_check_branch
        %211 = sbr.rel (%p209) target = $region20
      $region19: #{mlpconv2d_forward.1} parent=11 // pred_region
        _
      $region20: #{mlpconv2d_forward.1} parent=11 // pred_fallthru
        _
      // Predicated region
      $region21: #{mlpconv2d_forward.1} parent=11 // pred_check
        %p212 = pneg %p102
      $region22: #{mlpconv2d_forward.1} parent=11 // pred_check_branch
        %214 = sbr.rel (%p212) target = $region24
      $region23: #{mlpconv2d_forward.1} parent=11 // pred_region
        _
      $region24: #{mlpconv2d_forward.1} parent=11 // pred_fallthru
        _
      // Predicated region
      $region25: #{mlpconv2d_forward.1} parent=11 // pred_check
        %p215 = pneg %p123
      $region26: #{mlpconv2d_forward.1} parent=11 // pred_check_branch
        %217 = sbr.rel (%p215) target = $region28
      $region27: #{mlpconv2d_forward.1} parent=11 // pred_region
        _
      $region28: #{mlpconv2d_forward.1} parent=11 // pred_fallthru
        _
      // Predicated region
      $region29: #{mlpconv2d_forward.1} parent=11 // pred_check
        %p218 = pneg %p144
      $region30: #{mlpconv2d_forward.1} parent=11 // pred_check_branch
        %220 = sbr.rel (%p218) target = $region32
      $region31: #{mlpconv2d_forward.1} parent=11 // pred_region
        _
      $region32: #{mlpconv2d_forward.1} parent=11 // pred_fallthru
        _
      // Predicated region
      $region33: #{mlpconv2d_forward.1} parent=11 // pred_check
        %p221 = pneg %p165
      $region34: #{mlpconv2d_forward.1} parent=11 // pred_check_branch
        %223 = sbr.rel (%p221) target = $region36
      $region35: #{mlpconv2d_forward.1} parent=11 // pred_region
        _
      $region36: #{mlpconv2d_forward.1} parent=11 // pred_fallthru
        _
    $region12: #{mlpconv2d_forward.1} parent=5 // pred_fallthru
      _
    %p224 = scmp.lt.s32.totalorder %s13, 2
    // Predicated region
    $region37: #{mlpconv2d_forward.1} parent=5 // pred_check
      %p225 = pneg %p224
    $region38: #{mlpconv2d_forward.1} parent=5 // pred_check_branch
      %227 = sbr.rel (%p225) target = $region40
    $region39: #{mlpconv2d_forward.1} parent=5 // pred_region
      // Predicated region
      $region41: #{mlpconv2d_forward.1} parent=39 // pred_check
        %p228 = pneg %p33
      $region42: #{mlpconv2d_forward.1} parent=39 // pred_check_branch
        %230 = sbr.rel (%p228) target = $region44
      $region43: #{mlpconv2d_forward.1} parent=39 // pred_region
        %p231 = scmp.lt.s32.totalorder %s13, 1
        %s232 = scalar_select %p231, %s13, 1
        %s233 = smul.addr %s232, 3
        %s234 = smul.addr %s233, 2
        %s235 = scalar_lea.vmem %s0, %s234
      $region44: #{mlpconv2d_forward.1} parent=39 // pred_fallthru
        _
    $region40: #{mlpconv2d_forward.1} parent=5 // pred_fallthru
      _
    %p236 = scmp.le.s32.totalorder 1, %s13
    %p237 = scmp.lt.s32.totalorder %s13, 3
    %p238 = pnand %p236, %p237
    %p239 = pneg %p238
    // Predicated region
    $region45: #{mlpconv2d_forward.1} parent=5 // pred_check
      _
    $region46: #{mlpconv2d_forward.1} parent=5 // pred_check_branch
      %241 = sbr.rel (%p238) target = $region48
    $region47: #{mlpconv2d_forward.1} parent=5 // pred_region
      %s242 = ssub.s32 %s13, 1
      %p243 = scmp.lt.s32.totalorder %s18, 1
      %s244 = scalar_select %p243, %s18, 1
      %s245 = smul.addr %s244, 3
      %s246 = smul.addr %s245, 2
      %s247 = scalar_lea.vmem %s0, %s246
      %p248 = pneg %p39
      %p249 = pneg %p36
      %p250 = pneg %p60
      %p251 = pneg %p57
      %p252 = pneg %p81
      %p253 = pneg %p78
      %p254 = pneg %p102
      %p255 = pneg %p99
      %p256 = pneg %p123
      %p257 = pneg %p120
      %p258 = pneg %p144
      %p259 = pneg %p141
      %p260 = pneg %p165
      %p261 = pneg %p162
      %p262 = pneg %p191
      %p263 = pneg %p188
      %p264 = scmp.lt.s32.totalorder %s18, 1
      %s265 = scalar_select %p264, %s18, 1
      %s266 = smul.addr %s265, 6
      %s267 = smul.addr %s266, 8
      %s268 = scalar_lea.vmem %s7, %s267
      %p269 = scmp.lt.s32.totalorder %s18, 1
      %s270 = scalar_select %p269, %s18, 1
      %s271 = smul.addr %s270, 3
      %s272 = smul.addr %s271, 2
      %s273 = scalar_lea.vmem %s0, %s272
      %p274 = scmp.lt.s32.totalorder %s18, 1
      %s275 = scalar_select %p274, %s18, 1
      %s276 = smul.addr %s275, 6
      %s277 = smul.addr %s276, 8
      %s278 = scalar_lea.vmem %s7, %s277
      %v280 = vld [vmem:[%s1] sm:$0xf]
      %v281 = vld [vmem:[%s1 + $0x4] sm:$0xf]
      %v282 = vld [vmem:[%s1 + $0x8] sm:$0xf]
      %v283 = vld [vmem:[%s1 + $0xc] sm:$0xf]
      %v284 = vld [vmem:[%s1 + $0x10] sm:$0xf]
      %v285 = vld [vmem:[%s1 + $0x14] sm:$0xf]
      %v286 = vld [vmem:[%s1 + $0x18] sm:$0xf]
      %v287 = vld [vmem:[%s1 + $0x1c] sm:$0xf]
      %v288 = vld [vmem:[%s1 + $0x20] sm:$0xf]
      %v289 = vld [vmem:[%s2] sm:$0xff]
      %v290 = vld [vmem:[%s3] sm:$0xf]
      %v291 = vld [vmem:[%s4] sm:$0xff]
      %v292 = vld [vmem:[%s5] sm:$0xf]
      %v293 = vld [vmem:[%s5 + $0x4] sm:$0xf]
      %v294 = vld [vmem:[%s6] sm:$0xff]
      %v295 = vld [vmem:[%s6 + $0x8] sm:$0xff]
      %v296 = vld [vmem:[%s273] sm:$0x3f]
      %v298 = vcombine.high %v296, %v296
      %v300 = vunpack.c.l.s4 1983009808
      %v301 = vunpack.c.0.s8 %v300
      %v302 = vlaneseq
      %v303 = vshrl.u32 %v302, 7
      %v304 = vsub.s32 %v301, %v303
      %v305 = vrot.slane %v296, %v304
      %v307 = vunpack.c.l.s4 1983009808
      %v308 = vunpack.c.0.s8 %v307
      %v309 = vlaneseq
      %v310 = vshrl.u32 %v309, 7
      %v311 = vsub.s32 %v308, %v310
      %v312 = vrot.slane %v298, %v311
      %v313 = vcombine.high %v305, %v305
      %314 = vrot.lane.b32.xlu0 %v305, 127
      %v315 = vpop.permute.xlu0 %314
      %316 = vrot.lane.b32.xlu0 %v313, 127
      %v317 = vpop.permute.xlu0 %316
      %318 = vrot.lane.b32.xlu0 %v312, 127
      %v319 = vpop.permute.xlu0 %318
      %vm320 = vcmask 1039360
      %v321 = vsel %vm320, %v315, %v317
      %v322 = vsel %vm320, %v317, %v319
      %vm323 = vcmask 31744
      %v325 = vsel %vm323, %v281, 0
      %vm327 = vcmask 1041408
      %v329 = vsel %vm327, %v321, 0
      %v332 = vsel %vm327, %v322, 0
      %v335 = vsel %vm327, %v319, 0
      %337 = vmatprep.subr.bf16.mxu0 0
      %338 = vmatpush1.bf16.msra.mxu0 0
      %339 = vmatprep.subr.bf16.mxu0 0
      %340 = vmatpush1.bf16.msra.mxu0 0
      %341 = vmatprep.subr.bf16.mxu0 0
      %342 = vmatpush1.bf16.msra.mxu0 0
      %343 = vmatprep.subr.bf16.mxu0 0
      %344 = vmatpush1.bf16.msra.mxu0 0
      %345 = vmatprep.subr.bf16.mxu0 0
      %346 = vmatpush1.bf16.msra.mxu0 0
      %347 = vmatprep.subr.bf16.mxu0 0
      %348 = vmatpush1.bf16.msra.mxu0 0
      %349 = vmatprep.subr.bf16.mxu0 0
      %350 = vmatpush1.bf16.msra.mxu0 0
      %351 = vmatprep.subr.bf16.mxu0 %v332
      %352 = vmatpush1.bf16.msra.mxu0 %v329
      %353 = vmatprep.subr.bf16.mxu0 0
      %354 = vmatpush2.bf16.msra.mxu0 0
      %355 = vmatprep.subr.bf16.mxu0 0
      %356 = vmatpush2.bf16.msra.mxu0 0
      %357 = vmatprep.subr.bf16.mxu0 0
      %358 = vmatpush2.bf16.msra.mxu0 0
      %359 = vmatprep.subr.bf16.mxu0 0
      %360 = vmatpush2.bf16.msra.mxu0 0
      %361 = vmatprep.subr.bf16.mxu0 0
      %362 = vmatpush2.bf16.msra.mxu0 0
      %363 = vmatprep.subr.bf16.mxu0 0
      %364 = vmatpush2.bf16.msra.mxu0 0
      %365 = vmatprep.subr.bf16.mxu0 0
      %366 = vmatpush2.bf16.msra.mxu0 0
      %367 = vmatprep.subr.bf16.mxu0 0
      %368 = vmatpush2.bf16.msra.mxu0 0
      %369 = vmatprep.mubr.bf16.mxu0 0
      %370 = vmatmul.mubr.bf16.gmra.mxu0 %v325
      %v371 = vpop.f32.mrf.mxu0
      %v372 = vadd.f32 0.0, %v371
      %v373 = vpop.f32.mrf.mxu0
      %v374 = vadd.f32 0.0, %v373
      %v375 = vpop.f32.mrf.mxu0
      %v376 = vpop.f32.mrf.mxu0
      %377 = vdwg.mxu0
      %378 = vmatprep.subr.bf16.mxu0 0
      %379 = vmatpush1.bf16.msra.mxu0 0
      %380 = vmatprep.subr.bf16.mxu0 0
      %381 = vmatpush1.bf16.msra.mxu0 0
      %382 = vmatprep.subr.bf16.mxu0 0
      %383 = vmatpush1.bf16.msra.mxu0 0
      %384 = vmatprep.subr.bf16.mxu0 0
      %385 = vmatpush1.bf16.msra.mxu0 0
      %386 = vmatprep.subr.bf16.mxu0 0
      %387 = vmatpush1.bf16.msra.mxu0 0
      %388 = vmatprep.subr.bf16.mxu0 0
      %389 = vmatpush1.bf16.msra.mxu0 0
      %390 = vmatprep.subr.bf16.mxu0 0
      %391 = vmatpush1.bf16.msra.mxu0 0
      %392 = vmatprep.subr.bf16.mxu0 0
      %393 = vmatpush1.bf16.msra.mxu0 %v335
      %394 = vmatprep.subr.bf16.mxu0 0
      %395 = vmatpush2.bf16.msra.mxu0 0
      %396 = vmatprep.subr.bf16.mxu0 0
      %397 = vmatpush2.bf16.msra.mxu0 0
      %398 = vmatprep.subr.bf16.mxu0 0
      %399 = vmatpush2.bf16.msra.mxu0 0
      %400 = vmatprep.subr.bf16.mxu0 0
      %401 = vmatpush2.bf16.msra.mxu0 0
      %402 = vmatprep.subr.bf16.mxu0 0
      %403 = vmatpush2.bf16.msra.mxu0 0
      %404 = vmatprep.subr.bf16.mxu0 0
      %405 = vmatpush2.bf16.msra.mxu0 0
      %406 = vmatprep.subr.bf16.mxu0 0
      %407 = vmatpush2.bf16.msra.mxu0 0
      %408 = vmatprep.subr.bf16.mxu0 0
      %409 = vmatpush2.bf16.msra.mxu0 0
      %410 = vmatprep.mubr.bf16.mxu0 0
      %411 = vmatmul.mubr.bf16.gmra.mxu0 %v325
      %v412 = vpop.f32.mrf.mxu0
      %v413 = vadd.f32 0.0, %v412
      %v414 = vpop.f32.mrf.mxu0
      %v415 = vpop.f32.mrf.mxu0
      %v416 = vpop.f32.mrf.mxu0
      %417 = vdwg.mxu0
      %v419 = vsel %vm323, %v280, 0
      %v422 = vsel %vm327, %v305, 0
      %v425 = vsel %vm327, %v313, 0
      %v428 = vsel %vm327, %v312, 0
      %430 = vmatprep.subr.bf16.mxu0 0
      %431 = vmatpush1.bf16.msra.mxu0 0
      %432 = vmatprep.subr.bf16.mxu0 0
      %433 = vmatpush1.bf16.msra.mxu0 0
      %434 = vmatprep.subr.bf16.mxu0 0
      %435 = vmatpush1.bf16.msra.mxu0 0
      %436 = vmatprep.subr.bf16.mxu0 0
      %437 = vmatpush1.bf16.msra.mxu0 0
      %438 = vmatprep.subr.bf16.mxu0 0
      %439 = vmatpush1.bf16.msra.mxu0 0
      %440 = vmatprep.subr.bf16.mxu0 0
      %441 = vmatpush1.bf16.msra.mxu0 0
      %442 = vmatprep.subr.bf16.mxu0 0
      %443 = vmatpush1.bf16.msra.mxu0 0
      %444 = vmatprep.subr.bf16.mxu0 %v425
      %445 = vmatpush1.bf16.msra.mxu0 %v422
      %446 = vmatprep.subr.bf16.mxu0 0
      %447 = vmatpush2.bf16.msra.mxu0 0
      %448 = vmatprep.subr.bf16.mxu0 0
      %449 = vmatpush2.bf16.msra.mxu0 0
      %450 = vmatprep.subr.bf16.mxu0 0
      %451 = vmatpush2.bf16.msra.mxu0 0
      %452 = vmatprep.subr.bf16.mxu0 0
      %453 = vmatpush2.bf16.msra.mxu0 0
      %454 = vmatprep.subr.bf16.mxu0 0
      %455 = vmatpush2.bf16.msra.mxu0 0
      %456 = vmatprep.subr.bf16.mxu0 0
      %457 = vmatpush2.bf16.msra.mxu0 0
      %458 = vmatprep.subr.bf16.mxu0 0
      %459 = vmatpush2.bf16.msra.mxu0 0
      %460 = vmatprep.subr.bf16.mxu0 0
      %461 = vmatpush2.bf16.msra.mxu0 0
      %462 = vmatprep.mubr.bf16.mxu0 0
      %463 = vmatmul.mubr.bf16.gmra.mxu0 %v419
      %v464 = vpop.f32.mrf.mxu0
      %v465 = vadd.f32 %v372, %v464
      %v466 = vpop.f32.mrf.mxu0
      %v467 = vadd.f32 %v374, %v466
      %v468 = vpop.f32.mrf.mxu0
      %v469 = vpop.f32.mrf.mxu0
      %470 = vdwg.mxu0
      %471 = vmatprep.subr.bf16.mxu0 0
      %472 = vmatpush1.bf16.msra.mxu0 0
      %473 = vmatprep.subr.bf16.mxu0 0
      %474 = vmatpush1.bf16.msra.mxu0 0
      %475 = vmatprep.subr.bf16.mxu0 0
      %476 = vmatpush1.bf16.msra.mxu0 0
      %477 = vmatprep.subr.bf16.mxu0 0
      %478 = vmatpush1.bf16.msra.mxu0 0
      %479 = vmatprep.subr.bf16.mxu0 0
      %480 = vmatpush1.bf16.msra.mxu0 0
      %481 = vmatprep.subr.bf16.mxu0 0
      %482 = vmatpush1.bf16.msra.mxu0 0
      %483 = vmatprep.subr.bf16.mxu0 0
      %484 = vmatpush1.bf16.msra.mxu0 0
      %485 = vmatprep.subr.bf16.mxu0 0
      %486 = vmatpush1.bf16.msra.mxu0 %v428
      %487 = vmatprep.subr.bf16.mxu0 0
      %488 = vmatpush2.bf16.msra.mxu0 0
      %489 = vmatprep.subr.bf16.mxu0 0
      %490 = vmatpush2.bf16.msra.mxu0 0
      %491 = vmatprep.subr.bf16.mxu0 0
      %492 = vmatpush2.bf16.msra.mxu0 0
      %493 = vmatprep.subr.bf16.mxu0 0
      %494 = vmatpush2.bf16.msra.mxu0 0
      %495 = vmatprep.subr.bf16.mxu0 0
      %496 = vmatpush2.bf16.msra.mxu0 0
      %497 = vmatprep.subr.bf16.mxu0 0
      %498 = vmatpush2.bf16.msra.mxu0 0
      %499 = vmatprep.subr.bf16.mxu0 0
      %500 = vmatpush2.bf16.msra.mxu0 0
      %501 = vmatprep.subr.bf16.mxu0 0
      %502 = vmatpush2.bf16.msra.mxu0 0
      %503 = vmatprep.mubr.bf16.mxu0 0
      %504 = vmatmul.mubr.bf16.gmra.mxu0 %v419
      %v505 = vpop.f32.mrf.mxu0
      %v506 = vadd.f32 %v413, %v505
      %v507 = vpop.f32.mrf.mxu0
      %v508 = vpop.f32.mrf.mxu0
      %v509 = vpop.f32.mrf.mxu0
      %510 = vdwg.mxu0
      %v511 = vld [vmem:[%s273] sm:$0x3f]
      %v513 = vcombine.high %v511, %v511
      %v515 = vunpack.c.l.s4 1983009808
      %v516 = vunpack.c.0.s8 %v515
      %v517 = vlaneseq
      %v518 = vshrl.u32 %v517, 7
      %v519 = vsub.s32 %v516, %v518
      %v520 = vrot.slane %v511, %v519
      %v522 = vunpack.c.l.s4 1983009808
      %v523 = vunpack.c.0.s8 %v522
      %v524 = vlaneseq
      %v525 = vshrl.u32 %v524, 7
      %v526 = vsub.s32 %v523, %v525
      %v527 = vrot.slane %v513, %v526
      %v528 = vcombine.high %v520, %v520
      %529 = vrot.lane.b32.xlu0 %v520, 126
      %v530 = vpop.permute.xlu0 %529
      %531 = vrot.lane.b32.xlu0 %v528, 126
      %v532 = vpop.permute.xlu0 %531
      %533 = vrot.lane.b32.xlu0 %v527, 126
      %v534 = vpop.permute.xlu0 %533
      %vm535 = vcmask 1031168
      %v536 = vsel %vm535, %v530, %v532
      %v537 = vsel %vm535, %v532, %v534
      %v539 = vsel %vm323, %v282, 0
      %v542 = vsel %vm327, %v536, 0
      %v545 = vsel %vm327, %v537, 0
      %v548 = vsel %vm327, %v534, 0
      %550 = vmatprep.subr.bf16.mxu0 0
      %551 = vmatpush1.bf16.msra.mxu0 0
      %552 = vmatprep.subr.bf16.mxu0 0
      %553 = vmatpush1.bf16.msra.mxu0 0
      %554 = vmatprep.subr.bf16.mxu0 0
      %555 = vmatpush1.bf16.msra.mxu0 0
      %556 = vmatprep.subr.bf16.mxu0 0
      %557 = vmatpush1.bf16.msra.mxu0 0
      %558 = vmatprep.subr.bf16.mxu0 0
      %559 = vmatpush1.bf16.msra.mxu0 0
      %560 = vmatprep.subr.bf16.mxu0 0
      %561 = vmatpush1.bf16.msra.mxu0 0
      %562 = vmatprep.subr.bf16.mxu0 0
      %563 = vmatpush1.bf16.msra.mxu0 0
      %564 = vmatprep.subr.bf16.mxu0 %v545
      %565 = vmatpush1.bf16.msra.mxu0 %v542
      %566 = vmatprep.subr.bf16.mxu0 0
      %567 = vmatpush2.bf16.msra.mxu0 0
      %568 = vmatprep.subr.bf16.mxu0 0
      %569 = vmatpush2.bf16.msra.mxu0 0
      %570 = vmatprep.subr.bf16.mxu0 0
      %571 = vmatpush2.bf16.msra.mxu0 0
      %572 = vmatprep.subr.bf16.mxu0 0
      %573 = vmatpush2.bf16.msra.mxu0 0
      %574 = vmatprep.subr.bf16.mxu0 0
      %575 = vmatpush2.bf16.msra.mxu0 0
      %576 = vmatprep.subr.bf16.mxu0 0
      %577 = vmatpush2.bf16.msra.mxu0 0
      %578 = vmatprep.subr.bf16.mxu0 0
      %579 = vmatpush2.bf16.msra.mxu0 0
      %580 = vmatprep.subr.bf16.mxu0 0
      %581 = vmatpush2.bf16.msra.mxu0 0
      %582 = vmatprep.mubr.bf16.mxu0 0
      %583 = vmatmul.mubr.bf16.gmra.mxu0 %v539
      %v584 = vpop.f32.mrf.mxu0
      %v585 = vadd.f32 0.0, %v584
      %v586 = vpop.f32.mrf.mxu0
      %v587 = vadd.f32 0.0, %v586
      %v588 = vpop.f32.mrf.mxu0
      %v589 = vpop.f32.mrf.mxu0
      %590 = vdwg.mxu0
      %591 = vmatprep.subr.bf16.mxu0 0
      %592 = vmatpush1.bf16.msra.mxu0 0
      %593 = vmatprep.subr.bf16.mxu0 0
      %594 = vmatpush1.bf16.msra.mxu0 0
      %595 = vmatprep.subr.bf16.mxu0 0
      %596 = vmatpush1.bf16.msra.mxu0 0
      %597 = vmatprep.subr.bf16.mxu0 0
      %598 = vmatpush1.bf16.msra.mxu0 0
      %599 = vmatprep.subr.bf16.mxu0 0
      %600 = vmatpush1.bf16.msra.mxu0 0
      %601 = vmatprep.subr.bf16.mxu0 0
      %602 = vmatpush1.bf16.msra.mxu0 0
      %603 = vmatprep.subr.bf16.mxu0 0
      %604 = vmatpush1.bf16.msra.mxu0 0
      %605 = vmatprep.subr.bf16.mxu0 0
      %606 = vmatpush1.bf16.msra.mxu0 %v548
      %607 = vmatprep.subr.bf16.mxu0 0
      %608 = vmatpush2.bf16.msra.mxu0 0
      %609 = vmatprep.subr.bf16.mxu0 0
      %610 = vmatpush2.bf16.msra.mxu0 0
      %611 = vmatprep.subr.bf16.mxu0 0
      %612 = vmatpush2.bf16.msra.mxu0 0
      %613 = vmatprep.subr.bf16.mxu0 0
      %614 = vmatpush2.bf16.msra.mxu0 0
      %615 = vmatprep.subr.bf16.mxu0 0
      %616 = vmatpush2.bf16.msra.mxu0 0
      %617 = vmatprep.subr.bf16.mxu0 0
      %618 = vmatpush2.bf16.msra.mxu0 0
      %619 = vmatprep.subr.bf16.mxu0 0
      %620 = vmatpush2.bf16.msra.mxu0 0
      %621 = vmatprep.subr.bf16.mxu0 0
      %622 = vmatpush2.bf16.msra.mxu0 0
      %623 = vmatprep.mubr.bf16.mxu0 0
      %624 = vmatmul.mubr.bf16.gmra.mxu0 %v539
      %v625 = vpop.f32.mrf.mxu0
      %v626 = vadd.f32 0.0, %v625
      %v627 = vpop.f32.mrf.mxu0
      %v628 = vpop.f32.mrf.mxu0
      %v629 = vpop.f32.mrf.mxu0
      %630 = vdwg.mxu0
      %v631 = vadd.f32 %v465, %v585
      %v632 = vadd.f32 %v467, %v587
      %v633 = vadd.f32 %v506, %v626
      %v634 = vld [vmem:[%s273] sm:$0x3f]
      %v636 = vcombine.high %v634, %v634
      %v638 = vunpack.c.l.s4 1983009808
      %v639 = vunpack.c.0.s8 %v638
      %v640 = vlaneseq
      %v641 = vshrl.u32 %v640, 7
      %v642 = vsub.s32 %v639, %v641
      %v643 = vrot.slane %v634, %v642
      %v645 = vunpack.c.l.s4 1983009808
      %v646 = vunpack.c.0.s8 %v645
      %v647 = vlaneseq
      %v648 = vshrl.u32 %v647, 7
      %v649 = vsub.s32 %v646, %v648
      %v650 = vrot.slane %v636, %v649
      %v651 = vcombine.high %v643, %v643
      %652 = vrot.lane.b32.xlu0 %v643, 110
      %v653 = vpop.permute.xlu0 %652
      %654 = vrot.lane.b32.xlu0 %v651, 110
      %v655 = vpop.permute.xlu0 %654
      %656 = vrot.lane.b32.xlu0 %v650, 110
      %v657 = vpop.permute.xlu0 %656
      %vm658 = vcmask 900096
      %v659 = vsel %vm658, %v653, %v655
      %v660 = vsel %vm658, %v655, %v657
      %v662 = vsel %vm323, %v283, 0
      %v665 = vsel %vm327, %v659, 0
      %v668 = vsel %vm327, %v660, 0
      %v671 = vsel %vm327, %v657, 0
      %673 = vmatprep.subr.bf16.mxu0 0
      %674 = vmatpush1.bf16.msra.mxu0 0
      %675 = vmatprep.subr.bf16.mxu0 0
      %676 = vmatpush1.bf16.msra.mxu0 0
      %677 = vmatprep.subr.bf16.mxu0 0
      %678 = vmatpush1.bf16.msra.mxu0 0
      %679 = vmatprep.subr.bf16.mxu0 0
      %680 = vmatpush1.bf16.msra.mxu0 0
      %681 = vmatprep.subr.bf16.mxu0 0
      %682 = vmatpush1.bf16.msra.mxu0 0
      %683 = vmatprep.subr.bf16.mxu0 0
      %684 = vmatpush1.bf16.msra.mxu0 0
      %685 = vmatprep.subr.bf16.mxu0 0
      %686 = vmatpush1.bf16.msra.mxu0 0
      %687 = vmatprep.subr.bf16.mxu0 %v668
      %688 = vmatpush1.bf16.msra.mxu0 %v665
      %689 = vmatprep.subr.bf16.mxu0 0
      %690 = vmatpush2.bf16.msra.mxu0 0
      %691 = vmatprep.subr.bf16.mxu0 0
      %692 = vmatpush2.bf16.msra.mxu0 0
      %693 = vmatprep.subr.bf16.mxu0 0
      %694 = vmatpush2.bf16.msra.mxu0 0
      %695 = vmatprep.subr.bf16.mxu0 0
      %696 = vmatpush2.bf16.msra.mxu0 0
      %697 = vmatprep.subr.bf16.mxu0 0
      %698 = vmatpush2.bf16.msra.mxu0 0
      %699 = vmatprep.subr.bf16.mxu0 0
      %700 = vmatpush2.bf16.msra.mxu0 0
      %701 = vmatprep.subr.bf16.mxu0 0
      %702 = vmatpush2.bf16.msra.mxu0 0
      %703 = vmatprep.subr.bf16.mxu0 0
      %704 = vmatpush2.bf16.msra.mxu0 0
      %705 = vmatprep.mubr.bf16.mxu0 0
      %706 = vmatmul.mubr.bf16.gmra.mxu0 %v662
      %v707 = vpop.f32.mrf.mxu0
      %v708 = vadd.f32 0.0, %v707
      %v709 = vpop.f32.mrf.mxu0
      %v710 = vadd.f32 0.0, %v709
      %v711 = vpop.f32.mrf.mxu0
      %v712 = vpop.f32.mrf.mxu0
      %713 = vdwg.mxu0
      %714 = vmatprep.subr.bf16.mxu0 0
      %715 = vmatpush1.bf16.msra.mxu0 0
      %716 = vmatprep.subr.bf16.mxu0 0
      %717 = vmatpush1.bf16.msra.mxu0 0
      %718 = vmatprep.subr.bf16.mxu0 0
      %719 = vmatpush1.bf16.msra.mxu0 0
      %720 = vmatprep.subr.bf16.mxu0 0
      %721 = vmatpush1.bf16.msra.mxu0 0
      %722 = vmatprep.subr.bf16.mxu0 0
      %723 = vmatpush1.bf16.msra.mxu0 0
      %724 = vmatprep.subr.bf16.mxu0 0
      %725 = vmatpush1.bf16.msra.mxu0 0
      %726 = vmatprep.subr.bf16.mxu0 0
      %727 = vmatpush1.bf16.msra.mxu0 0
      %728 = vmatprep.subr.bf16.mxu0 0
      %729 = vmatpush1.bf16.msra.mxu0 %v671
      %730 = vmatprep.subr.bf16.mxu0 0
      %731 = vmatpush2.bf16.msra.mxu0 0
      %732 = vmatprep.subr.bf16.mxu0 0
      %733 = vmatpush2.bf16.msra.mxu0 0
      %734 = vmatprep.subr.bf16.mxu0 0
      %735 = vmatpush2.bf16.msra.mxu0 0
      %736 = vmatprep.subr.bf16.mxu0 0
      %737 = vmatpush2.bf16.msra.mxu0 0
      %738 = vmatprep.subr.bf16.mxu0 0
      %739 = vmatpush2.bf16.msra.mxu0 0
      %740 = vmatprep.subr.bf16.mxu0 0
      %741 = vmatpush2.bf16.msra.mxu0 0
      %742 = vmatprep.subr.bf16.mxu0 0
      %743 = vmatpush2.bf16.msra.mxu0 0
      %744 = vmatprep.subr.bf16.mxu0 0
      %745 = vmatpush2.bf16.msra.mxu0 0
      %746 = vmatprep.mubr.bf16.mxu0 0
      %747 = vmatmul.mubr.bf16.gmra.mxu0 %v662
      %v748 = vpop.f32.mrf.mxu0
      %v749 = vadd.f32 0.0, %v748
      %v750 = vpop.f32.mrf.mxu0
      %v751 = vpop.f32.mrf.mxu0
      %v752 = vpop.f32.mrf.mxu0
      %753 = vdwg.mxu0
      %v754 = vadd.f32 %v631, %v708
      %v755 = vadd.f32 %v632, %v710
      %v756 = vadd.f32 %v633, %v749
      %v757 = vld [vmem:[%s273] sm:$0x3f]
      %v759 = vcombine.high %v757, %v757
      %v761 = vunpack.c.l.s4 1983009808
      %v762 = vunpack.c.0.s8 %v761
      %v763 = vlaneseq
      %v764 = vshrl.u32 %v763, 7
      %v765 = vsub.s32 %v762, %v764
      %v766 = vrot.slane %v757, %v765
      %v768 = vunpack.c.l.s4 1983009808
      %v769 = vunpack.c.0.s8 %v768
      %v770 = vlaneseq
      %v771 = vshrl.u32 %v770, 7
      %v772 = vsub.s32 %v769, %v771
      %v773 = vrot.slane %v759, %v772
      %v774 = vcombine.high %v766, %v766
      %775 = vrot.lane.b32.xlu0 %v766, 109
      %v776 = vpop.permute.xlu0 %775
      %777 = vrot.lane.b32.xlu0 %v774, 109
      %v778 = vpop.permute.xlu0 %777
      %779 = vrot.lane.b32.xlu0 %v773, 109
      %v780 = vpop.permute.xlu0 %779
      %vm781 = vcmask 891904
      %v782 = vsel %vm781, %v776, %v778
      %v783 = vsel %vm781, %v778, %v780
      %v785 = vsel %vm323, %v284, 0
      %v788 = vsel %vm327, %v782, 0
      %v791 = vsel %vm327, %v783, 0
      %v794 = vsel %vm327, %v780, 0
      %796 = vmatprep.subr.bf16.mxu0 0
      %797 = vmatpush1.bf16.msra.mxu0 0
      %798 = vmatprep.subr.bf16.mxu0 0
      %799 = vmatpush1.bf16.msra.mxu0 0
      %800 = vmatprep.subr.bf16.mxu0 0
      %801 = vmatpush1.bf16.msra.mxu0 0
      %802 = vmatprep.subr.bf16.mxu0 0
      %803 = vmatpush1.bf16.msra.mxu0 0
      %804 = vmatprep.subr.bf16.mxu0 0
      %805 = vmatpush1.bf16.msra.mxu0 0
      %806 = vmatprep.subr.bf16.mxu0 0
      %807 = vmatpush1.bf16.msra.mxu0 0
      %808 = vmatprep.subr.bf16.mxu0 0
      %809 = vmatpush1.bf16.msra.mxu0 0
      %810 = vmatprep.subr.bf16.mxu0 %v791
      %811 = vmatpush1.bf16.msra.mxu0 %v788
      %812 = vmatprep.subr.bf16.mxu0 0
      %813 = vmatpush2.bf16.msra.mxu0 0
      %814 = vmatprep.subr.bf16.mxu0 0
      %815 = vmatpush2.bf16.msra.mxu0 0
      %816 = vmatprep.subr.bf16.mxu0 0
      %817 = vmatpush2.bf16.msra.mxu0 0
      %818 = vmatprep.subr.bf16.mxu0 0
      %819 = vmatpush2.bf16.msra.mxu0 0
      %820 = vmatprep.subr.bf16.mxu0 0
      %821 = vmatpush2.bf16.msra.mxu0 0
      %822 = vmatprep.subr.bf16.mxu0 0
      %823 = vmatpush2.bf16.msra.mxu0 0
      %824 = vmatprep.subr.bf16.mxu0 0
      %825 = vmatpush2.bf16.msra.mxu0 0
      %826 = vmatprep.subr.bf16.mxu0 0
      %827 = vmatpush2.bf16.msra.mxu0 0
      %828 = vmatprep.mubr.bf16.mxu0 0
      %829 = vmatmul.mubr.bf16.gmra.mxu0 %v785
      %v830 = vpop.f32.mrf.mxu0
      %v831 = vadd.f32 0.0, %v830
      %v832 = vpop.f32.mrf.mxu0
      %v833 = vadd.f32 0.0, %v832
      %v834 = vpop.f32.mrf.mxu0
      %v835 = vpop.f32.mrf.mxu0
      %836 = vdwg.mxu0
      %837 = vmatprep.subr.bf16.mxu0 0
      %838 = vmatpush1.bf16.msra.mxu0 0
      %839 = vmatprep.subr.bf16.mxu0 0
      %840 = vmatpush1.bf16.msra.mxu0 0
      %841 = vmatprep.subr.bf16.mxu0 0
      %842 = vmatpush1.bf16.msra.mxu0 0
      %843 = vmatprep.subr.bf16.mxu0 0
      %844 = vmatpush1.bf16.msra.mxu0 0
      %845 = vmatprep.subr.bf16.mxu0 0
      %846 = vmatpush1.bf16.msra.mxu0 0
      %847 = vmatprep.subr.bf16.mxu0 0
      %848 = vmatpush1.bf16.msra.mxu0 0
      %849 = vmatprep.subr.bf16.mxu0 0
      %850 = vmatpush1.bf16.msra.mxu0 0
      %851 = vmatprep.subr.bf16.mxu0 0
      %852 = vmatpush1.bf16.msra.mxu0 %v794
      %853 = vmatprep.subr.bf16.mxu0 0
      %854 = vmatpush2.bf16.msra.mxu0 0
      %855 = vmatprep.subr.bf16.mxu0 0
      %856 = vmatpush2.bf16.msra.mxu0 0
      %857 = vmatprep.subr.bf16.mxu0 0
      %858 = vmatpush2.bf16.msra.mxu0 0
      %859 = vmatprep.subr.bf16.mxu0 0
      %860 = vmatpush2.bf16.msra.mxu0 0
      %861 = vmatprep.subr.bf16.mxu0 0
      %862 = vmatpush2.bf16.msra.mxu0 0
      %863 = vmatprep.subr.bf16.mxu0 0
      %864 = vmatpush2.bf16.msra.mxu0 0
      %865 = vmatprep.subr.bf16.mxu0 0
      %866 = vmatpush2.bf16.msra.mxu0 0
      %867 = vmatprep.subr.bf16.mxu0 0
      %868 = vmatpush2.bf16.msra.mxu0 0
      %869 = vmatprep.mubr.bf16.mxu0 0
      %870 = vmatmul.mubr.bf16.gmra.mxu0 %v785
      %v871 = vpop.f32.mrf.mxu0
      %v872 = vadd.f32 0.0, %v871
      %v873 = vpop.f32.mrf.mxu0
      %v874 = vpop.f32.mrf.mxu0
      %v875 = vpop.f32.mrf.mxu0
      %876 = vdwg.mxu0
      %v877 = vadd.f32 %v754, %v831
      %v878 = vadd.f32 %v755, %v833
      %v879 = vadd.f32 %v756, %v872
      %v880 = vld [vmem:[%s273] sm:$0x3f]
      %v882 = vcombine.high %v880, %v880
      %v884 = vunpack.c.l.s4 1983009808
      %v885 = vunpack.c.0.s8 %v884
      %v886 = vlaneseq
      %v887 = vshrl.u32 %v886, 7
      %v888 = vsub.s32 %v885, %v887
      %v889 = vrot.slane %v880, %v888
      %v891 = vunpack.c.l.s4 1983009808
      %v892 = vunpack.c.0.s8 %v891
      %v893 = vlaneseq
      %v894 = vshrl.u32 %v893, 7
      %v895 = vsub.s32 %v892, %v894
      %v896 = vrot.slane %v882, %v895
      %v897 = vcombine.high %v889, %v889
      %898 = vrot.lane.b32.xlu0 %v889, 108
      %v899 = vpop.permute.xlu0 %898
      %900 = vrot.lane.b32.xlu0 %v897, 108
      %v901 = vpop.permute.xlu0 %900
      %902 = vrot.lane.b32.xlu0 %v896, 108
      %v903 = vpop.permute.xlu0 %902
      %vm904 = vcmask 883712
      %v905 = vsel %vm904, %v899, %v901
      %v906 = vsel %vm904, %v901, %v903
      %v908 = vsel %vm323, %v285, 0
      %v911 = vsel %vm327, %v905, 0
      %v914 = vsel %vm327, %v906, 0
      %v917 = vsel %vm327, %v903, 0
      %919 = vmatprep.subr.bf16.mxu0 0
      %920 = vmatpush1.bf16.msra.mxu0 0
      %921 = vmatprep.subr.bf16.mxu0 0
      %922 = vmatpush1.bf16.msra.mxu0 0
      %923 = vmatprep.subr.bf16.mxu0 0
      %924 = vmatpush1.bf16.msra.mxu0 0
      %925 = vmatprep.subr.bf16.mxu0 0
      %926 = vmatpush1.bf16.msra.mxu0 0
      %927 = vmatprep.subr.bf16.mxu0 0
      %928 = vmatpush1.bf16.msra.mxu0 0
      %929 = vmatprep.subr.bf16.mxu0 0
      %930 = vmatpush1.bf16.msra.mxu0 0
      %931 = vmatprep.subr.bf16.mxu0 0
      %932 = vmatpush1.bf16.msra.mxu0 0
      %933 = vmatprep.subr.bf16.mxu0 %v914
      %934 = vmatpush1.bf16.msra.mxu0 %v911
      %935 = vmatprep.subr.bf16.mxu0 0
      %936 = vmatpush2.bf16.msra.mxu0 0
      %937 = vmatprep.subr.bf16.mxu0 0
      %938 = vmatpush2.bf16.msra.mxu0 0
      %939 = vmatprep.subr.bf16.mxu0 0
      %940 = vmatpush2.bf16.msra.mxu0 0
      %941 = vmatprep.subr.bf16.mxu0 0
      %942 = vmatpush2.bf16.msra.mxu0 0
      %943 = vmatprep.subr.bf16.mxu0 0
      %944 = vmatpush2.bf16.msra.mxu0 0
      %945 = vmatprep.subr.bf16.mxu0 0
      %946 = vmatpush2.bf16.msra.mxu0 0
      %947 = vmatprep.subr.bf16.mxu0 0
      %948 = vmatpush2.bf16.msra.mxu0 0
      %949 = vmatprep.subr.bf16.mxu0 0
      %950 = vmatpush2.bf16.msra.mxu0 0
      %951 = vmatprep.mubr.bf16.mxu0 0
      %952 = vmatmul.mubr.bf16.gmra.mxu0 %v908
      %v953 = vpop.f32.mrf.mxu0
      %v954 = vadd.f32 0.0, %v953
      %v955 = vpop.f32.mrf.mxu0
      %v956 = vadd.f32 0.0, %v955
      %v957 = vpop.f32.mrf.mxu0
      %v958 = vpop.f32.mrf.mxu0
      %959 = vdwg.mxu0
      %960 = vmatprep.subr.bf16.mxu0 0
      %961 = vmatpush1.bf16.msra.mxu0 0
      %962 = vmatprep.subr.bf16.mxu0 0
      %963 = vmatpush1.bf16.msra.mxu0 0
      %964 = vmatprep.subr.bf16.mxu0 0
      %965 = vmatpush1.bf16.msra.mxu0 0
      %966 = vmatprep.subr.bf16.mxu0 0
      %967 = vmatpush1.bf16.msra.mxu0 0
      %968 = vmatprep.subr.bf16.mxu0 0
      %969 = vmatpush1.bf16.msra.mxu0 0
      %970 = vmatprep.subr.bf16.mxu0 0
      %971 = vmatpush1.bf16.msra.mxu0 0
      %972 = vmatprep.subr.bf16.mxu0 0
      %973 = vmatpush1.bf16.msra.mxu0 0
      %974 = vmatprep.subr.bf16.mxu0 0
      %975 = vmatpush1.bf16.msra.mxu0 %v917
      %976 = vmatprep.subr.bf16.mxu0 0
      %977 = vmatpush2.bf16.msra.mxu0 0
      %978 = vmatprep.subr.bf16.mxu0 0
      %979 = vmatpush2.bf16.msra.mxu0 0
      %980 = vmatprep.subr.bf16.mxu0 0
      %981 = vmatpush2.bf16.msra.mxu0 0
      %982 = vmatprep.subr.bf16.mxu0 0
      %983 = vmatpush2.bf16.msra.mxu0 0
      %984 = vmatprep.subr.bf16.mxu0 0
      %985 = vmatpush2.bf16.msra.mxu0 0
      %986 = vmatprep.subr.bf16.mxu0 0
      %987 = vmatpush2.bf16.msra.mxu0 0
      %988 = vmatprep.subr.bf16.mxu0 0
      %989 = vmatpush2.bf16.msra.mxu0 0
      %990 = vmatprep.subr.bf16.mxu0 0
      %991 = vmatpush2.bf16.msra.mxu0 0
      %992 = vmatprep.mubr.bf16.mxu0 0
      %993 = vmatmul.mubr.bf16.gmra.mxu0 %v908
      %v994 = vpop.f32.mrf.mxu0
      %v995 = vadd.f32 0.0, %v994
      %v996 = vpop.f32.mrf.mxu0
      %v997 = vpop.f32.mrf.mxu0
      %v998 = vpop.f32.mrf.mxu0
      %999 = vdwg.mxu0
      %v1000 = vadd.f32 %v877, %v954
      %v1001 = vadd.f32 %v878, %v956
      %v1002 = vadd.f32 %v879, %v995
      %v1003 = vld [vmem:[%s273] sm:$0x3f]
      %v1005 = vcombine.high %v1003, %v1003
      %v1007 = vunpack.c.l.s4 1983009808
      %v1008 = vunpack.c.0.s8 %v1007
      %v1009 = vlaneseq
      %v1010 = vshrl.u32 %v1009, 7
      %v1011 = vsub.s32 %v1008, %v1010
      %v1012 = vrot.slane %v1003, %v1011
      %v1014 = vunpack.c.l.s4 1983009808
      %v1015 = vunpack.c.0.s8 %v1014
      %v1016 = vlaneseq
      %v1017 = vshrl.u32 %v1016, 7
      %v1018 = vsub.s32 %v1015, %v1017
      %v1019 = vrot.slane %v1005, %v1018
      %v1020 = vcombine.high %v1012, %v1012
      %1021 = vrot.lane.b32.xlu0 %v1012, 92
      %v1022 = vpop.permute.xlu0 %1021
      %1023 = vrot.lane.b32.xlu0 %v1020, 92
      %v1024 = vpop.permute.xlu0 %1023
      %1025 = vrot.lane.b32.xlu0 %v1019, 92
      %v1026 = vpop.permute.xlu0 %1025
      %vm1027 = vcmask 752640
      %v1028 = vsel %vm1027, %v1022, %v1024
      %v1029 = vsel %vm1027, %v1024, %v1026
      %v1031 = vsel %vm323, %v286, 0
      %v1034 = vsel %vm327, %v1028, 0
      %v1037 = vsel %vm327, %v1029, 0
      %v1040 = vsel %vm327, %v1026, 0
      %1042 = vmatprep.subr.bf16.mxu0 0
      %1043 = vmatpush1.bf16.msra.mxu0 0
      %1044 = vmatprep.subr.bf16.mxu0 0
      %1045 = vmatpush1.bf16.msra.mxu0 0
      %1046 = vmatprep.subr.bf16.mxu0 0
      %1047 = vmatpush1.bf16.msra.mxu0 0
      %1048 = vmatprep.subr.bf16.mxu0 0
      %1049 = vmatpush1.bf16.msra.mxu0 0
      %1050 = vmatprep.subr.bf16.mxu0 0
      %1051 = vmatpush1.bf16.msra.mxu0 0
      %1052 = vmatprep.subr.bf16.mxu0 0
      %1053 = vmatpush1.bf16.msra.mxu0 0
      %1054 = vmatprep.subr.bf16.mxu0 0
      %1055 = vmatpush1.bf16.msra.mxu0 0
      %1056 = vmatprep.subr.bf16.mxu0 %v1037
      %1057 = vmatpush1.bf16.msra.mxu0 %v1034
      %1058 = vmatprep.subr.bf16.mxu0 0
      %1059 = vmatpush2.bf16.msra.mxu0 0
      %1060 = vmatprep.subr.bf16.mxu0 0
      %1061 = vmatpush2.bf16.msra.mxu0 0
      %1062 = vmatprep.subr.bf16.mxu0 0
      %1063 = vmatpush2.bf16.msra.mxu0 0
      %1064 = vmatprep.subr.bf16.mxu0 0
      %1065 = vmatpush2.bf16.msra.mxu0 0
      %1066 = vmatprep.subr.bf16.mxu0 0
      %1067 = vmatpush2.bf16.msra.mxu0 0
      %1068 = vmatprep.subr.bf16.mxu0 0
      %1069 = vmatpush2.bf16.msra.mxu0 0
      %1070 = vmatprep.subr.bf16.mxu0 0
      %1071 = vmatpush2.bf16.msra.mxu0 0
      %1072 = vmatprep.subr.bf16.mxu0 0
      %1073 = vmatpush2.bf16.msra.mxu0 0
      %1074 = vmatprep.mubr.bf16.mxu0 0
      %1075 = vmatmul.mubr.bf16.gmra.mxu0 %v1031
      %v1076 = vpop.f32.mrf.mxu0
      %v1077 = vadd.f32 0.0, %v1076
      %v1078 = vpop.f32.mrf.mxu0
      %v1079 = vadd.f32 0.0, %v1078
      %v1080 = vpop.f32.mrf.mxu0
      %v1081 = vpop.f32.mrf.mxu0
      %1082 = vdwg.mxu0
      %1083 = vmatprep.subr.bf16.mxu0 0
      %1084 = vmatpush1.bf16.msra.mxu0 0
      %1085 = vmatprep.subr.bf16.mxu0 0
      %1086 = vmatpush1.bf16.msra.mxu0 0
      %1087 = vmatprep.subr.bf16.mxu0 0
      %1088 = vmatpush1.bf16.msra.mxu0 0
      %1089 = vmatprep.subr.bf16.mxu0 0
      %1090 = vmatpush1.bf16.msra.mxu0 0
      %1091 = vmatprep.subr.bf16.mxu0 0
      %1092 = vmatpush1.bf16.msra.mxu0 0
      %1093 = vmatprep.subr.bf16.mxu0 0
      %1094 = vmatpush1.bf16.msra.mxu0 0
      %1095 = vmatprep.subr.bf16.mxu0 0
      %1096 = vmatpush1.bf16.msra.mxu0 0
      %1097 = vmatprep.subr.bf16.mxu0 0
      %1098 = vmatpush1.bf16.msra.mxu0 %v1040
      %1099 = vmatprep.subr.bf16.mxu0 0
      %1100 = vmatpush2.bf16.msra.mxu0 0
      %1101 = vmatprep.subr.bf16.mxu0 0
      %1102 = vmatpush2.bf16.msra.mxu0 0
      %1103 = vmatprep.subr.bf16.mxu0 0
      %1104 = vmatpush2.bf16.msra.mxu0 0
      %1105 = vmatprep.subr.bf16.mxu0 0
      %1106 = vmatpush2.bf16.msra.mxu0 0
      %1107 = vmatprep.subr.bf16.mxu0 0
      %1108 = vmatpush2.bf16.msra.mxu0 0
      %1109 = vmatprep.subr.bf16.mxu0 0
      %1110 = vmatpush2.bf16.msra.mxu0 0
      %1111 = vmatprep.subr.bf16.mxu0 0
      %1112 = vmatpush2.bf16.msra.mxu0 0
      %1113 = vmatprep.subr.bf16.mxu0 0
      %1114 = vmatpush2.bf16.msra.mxu0 0
      %1115 = vmatprep.mubr.bf16.mxu0 0
      %1116 = vmatmul.mubr.bf16.gmra.mxu0 %v1031
      %v1117 = vpop.f32.mrf.mxu0
      %v1118 = vadd.f32 0.0, %v1117
      %v1119 = vpop.f32.mrf.mxu0
      %v1120 = vpop.f32.mrf.mxu0
      %v1121 = vpop.f32.mrf.mxu0
      %1122 = vdwg.mxu0
      %v1123 = vadd.f32 %v1000, %v1077
      %v1124 = vadd.f32 %v1001, %v1079
      %v1125 = vadd.f32 %v1002, %v1118
      %v1126 = vld [vmem:[%s273] sm:$0x3f]
      %v1128 = vcombine.high %v1126, %v1126
      %v1130 = vunpack.c.l.s4 1983009808
      %v1131 = vunpack.c.0.s8 %v1130
      %v1132 = vlaneseq
      %v1133 = vshrl.u32 %v1132, 7
      %v1134 = vsub.s32 %v1131, %v1133
      %v1135 = vrot.slane %v1126, %v1134
      %v1137 = vunpack.c.l.s4 1983009808
      %v1138 = vunpack.c.0.s8 %v1137
      %v1139 = vlaneseq
      %v1140 = vshrl.u32 %v1139, 7
      %v1141 = vsub.s32 %v1138, %v1140
      %v1142 = vrot.slane %v1128, %v1141
      %v1143 = vcombine.high %v1135, %v1135
      %1144 = vrot.lane.b32.xlu0 %v1135, 91
      %v1145 = vpop.permute.xlu0 %1144
      %1146 = vrot.lane.b32.xlu0 %v1143, 91
      %v1147 = vpop.permute.xlu0 %1146
      %1148 = vrot.lane.b32.xlu0 %v1142, 91
      %v1149 = vpop.permute.xlu0 %1148
      %vm1150 = vcmask 744448
      %v1151 = vsel %vm1150, %v1145, %v1147
      %v1152 = vsel %vm1150, %v1147, %v1149
      %v1154 = vsel %vm323, %v287, 0
      %v1157 = vsel %vm327, %v1151, 0
      %v1160 = vsel %vm327, %v1152, 0
      %v1163 = vsel %vm327, %v1149, 0
      %1165 = vmatprep.subr.bf16.mxu0 0
      %1166 = vmatpush1.bf16.msra.mxu0 0
      %1167 = vmatprep.subr.bf16.mxu0 0
      %1168 = vmatpush1.bf16.msra.mxu0 0
      %1169 = vmatprep.subr.bf16.mxu0 0
      %1170 = vmatpush1.bf16.msra.mxu0 0
      %1171 = vmatprep.subr.bf16.mxu0 0
      %1172 = vmatpush1.bf16.msra.mxu0 0
      %1173 = vmatprep.subr.bf16.mxu0 0
      %1174 = vmatpush1.bf16.msra.mxu0 0
      %1175 = vmatprep.subr.bf16.mxu0 0
      %1176 = vmatpush1.bf16.msra.mxu0 0
      %1177 = vmatprep.subr.bf16.mxu0 0
      %1178 = vmatpush1.bf16.msra.mxu0 0
      %1179 = vmatprep.subr.bf16.mxu0 %v1160
      %1180 = vmatpush1.bf16.msra.mxu0 %v1157
      %1181 = vmatprep.subr.bf16.mxu0 0
      %1182 = vmatpush2.bf16.msra.mxu0 0
      %1183 = vmatprep.subr.bf16.mxu0 0
      %1184 = vmatpush2.bf16.msra.mxu0 0
      %1185 = vmatprep.subr.bf16.mxu0 0
      %1186 = vmatpush2.bf16.msra.mxu0 0
      %1187 = vmatprep.subr.bf16.mxu0 0
      %1188 = vmatpush2.bf16.msra.mxu0 0
      %1189 = vmatprep.subr.bf16.mxu0 0
      %1190 = vmatpush2.bf16.msra.mxu0 0
      %1191 = vmatprep.subr.bf16.mxu0 0
      %1192 = vmatpush2.bf16.msra.mxu0 0
      %1193 = vmatprep.subr.bf16.mxu0 0
      %1194 = vmatpush2.bf16.msra.mxu0 0
      %1195 = vmatprep.subr.bf16.mxu0 0
      %1196 = vmatpush2.bf16.msra.mxu0 0
      %1197 = vmatprep.mubr.bf16.mxu0 0
      %1198 = vmatmul.mubr.bf16.gmra.mxu0 %v1154
      %v1199 = vpop.f32.mrf.mxu0
      %v1200 = vadd.f32 0.0, %v1199
      %v1201 = vpop.f32.mrf.mxu0
      %v1202 = vadd.f32 0.0, %v1201
      %v1203 = vpop.f32.mrf.mxu0
      %v1204 = vpop.f32.mrf.mxu0
      %1205 = vdwg.mxu0
      %1206 = vmatprep.subr.bf16.mxu0 0
      %1207 = vmatpush1.bf16.msra.mxu0 0
      %1208 = vmatprep.subr.bf16.mxu0 0
      %1209 = vmatpush1.bf16.msra.mxu0 0
      %1210 = vmatprep.subr.bf16.mxu0 0
      %1211 = vmatpush1.bf16.msra.mxu0 0
      %1212 = vmatprep.subr.bf16.mxu0 0
      %1213 = vmatpush1.bf16.msra.mxu0 0
      %1214 = vmatprep.subr.bf16.mxu0 0
      %1215 = vmatpush1.bf16.msra.mxu0 0
      %1216 = vmatprep.subr.bf16.mxu0 0
      %1217 = vmatpush1.bf16.msra.mxu0 0
      %1218 = vmatprep.subr.bf16.mxu0 0
      %1219 = vmatpush1.bf16.msra.mxu0 0
      %1220 = vmatprep.subr.bf16.mxu0 0
      %1221 = vmatpush1.bf16.msra.mxu0 %v1163
      %1222 = vmatprep.subr.bf16.mxu0 0
      %1223 = vmatpush2.bf16.msra.mxu0 0
      %1224 = vmatprep.subr.bf16.mxu0 0
      %1225 = vmatpush2.bf16.msra.mxu0 0
      %1226 = vmatprep.subr.bf16.mxu0 0
      %1227 = vmatpush2.bf16.msra.mxu0 0
      %1228 = vmatprep.subr.bf16.mxu0 0
      %1229 = vmatpush2.bf16.msra.mxu0 0
      %1230 = vmatprep.subr.bf16.mxu0 0
      %1231 = vmatpush2.bf16.msra.mxu0 0
      %1232 = vmatprep.subr.bf16.mxu0 0
      %1233 = vmatpush2.bf16.msra.mxu0 0
      %1234 = vmatprep.subr.bf16.mxu0 0
      %1235 = vmatpush2.bf16.msra.mxu0 0
      %1236 = vmatprep.subr.bf16.mxu0 0
      %1237 = vmatpush2.bf16.msra.mxu0 0
      %1238 = vmatprep.mubr.bf16.mxu0 0
      %1239 = vmatmul.mubr.bf16.gmra.mxu0 %v1154
      %v1240 = vpop.f32.mrf.mxu0
      %v1241 = vadd.f32 0.0, %v1240
      %v1242 = vpop.f32.mrf.mxu0
      %v1243 = vpop.f32.mrf.mxu0
      %v1244 = vpop.f32.mrf.mxu0
      %1245 = vdwg.mxu0
      %v1246 = vadd.f32 %v1123, %v1200
      %v1247 = vadd.f32 %v1124, %v1202
      %v1248 = vadd.f32 %v1125, %v1241
      %v1249 = vld [vmem:[%s273] sm:$0x3f]
      %v1251 = vcombine.high %v1249, %v1249
      %v1253 = vunpack.c.l.s4 1983009808
      %v1254 = vunpack.c.0.s8 %v1253
      %v1255 = vlaneseq
      %v1256 = vshrl.u32 %v1255, 7
      %v1257 = vsub.s32 %v1254, %v1256
      %v1258 = vrot.slane %v1249, %v1257
      %v1260 = vunpack.c.l.s4 1983009808
      %v1261 = vunpack.c.0.s8 %v1260
      %v1262 = vlaneseq
      %v1263 = vshrl.u32 %v1262, 7
      %v1264 = vsub.s32 %v1261, %v1263
      %v1265 = vrot.slane %v1251, %v1264
      %v1266 = vcombine.high %v1258, %v1258
      %1267 = vrot.lane.b32.xlu0 %v1258, 90
      %v1268 = vpop.permute.xlu0 %1267
      %1269 = vrot.lane.b32.xlu0 %v1266, 90
      %v1270 = vpop.permute.xlu0 %1269
      %1271 = vrot.lane.b32.xlu0 %v1265, 90
      %v1272 = vpop.permute.xlu0 %1271
      %vm1273 = vcmask 736256
      %v1274 = vsel %vm1273, %v1268, %v1270
      %v1275 = vsel %vm1273, %v1270, %v1272
      %v1277 = vsel %vm323, %v288, 0
      %v1280 = vsel %vm327, %v1274, 0
      %v1283 = vsel %vm327, %v1275, 0
      %v1286 = vsel %vm327, %v1272, 0
      %1288 = vmatprep.subr.bf16.mxu0 0
      %1289 = vmatpush1.bf16.msra.mxu0 0
      %1290 = vmatprep.subr.bf16.mxu0 0
      %1291 = vmatpush1.bf16.msra.mxu0 0
      %1292 = vmatprep.subr.bf16.mxu0 0
      %1293 = vmatpush1.bf16.msra.mxu0 0
      %1294 = vmatprep.subr.bf16.mxu0 0
      %1295 = vmatpush1.bf16.msra.mxu0 0
      %1296 = vmatprep.subr.bf16.mxu0 0
      %1297 = vmatpush1.bf16.msra.mxu0 0
      %1298 = vmatprep.subr.bf16.mxu0 0
      %1299 = vmatpush1.bf16.msra.mxu0 0
      %1300 = vmatprep.subr.bf16.mxu0 0
      %1301 = vmatpush1.bf16.msra.mxu0 0
      %1302 = vmatprep.subr.bf16.mxu0 %v1283
      %1303 = vmatpush1.bf16.msra.mxu0 %v1280
      %1304 = vmatprep.subr.bf16.mxu0 0
      %1305 = vmatpush2.bf16.msra.mxu0 0
      %1306 = vmatprep.subr.bf16.mxu0 0
      %1307 = vmatpush2.bf16.msra.mxu0 0
      %1308 = vmatprep.subr.bf16.mxu0 0
      %1309 = vmatpush2.bf16.msra.mxu0 0
      %1310 = vmatprep.subr.bf16.mxu0 0
      %1311 = vmatpush2.bf16.msra.mxu0 0
      %1312 = vmatprep.subr.bf16.mxu0 0
      %1313 = vmatpush2.bf16.msra.mxu0 0
      %1314 = vmatprep.subr.bf16.mxu0 0
      %1315 = vmatpush2.bf16.msra.mxu0 0
      %1316 = vmatprep.subr.bf16.mxu0 0
      %1317 = vmatpush2.bf16.msra.mxu0 0
      %1318 = vmatprep.subr.bf16.mxu0 0
      %1319 = vmatpush2.bf16.msra.mxu0 0
      %1320 = vmatprep.mubr.bf16.mxu0 0
      %1321 = vmatmul.mubr.bf16.gmra.mxu0 %v1277
      %v1322 = vpop.f32.mrf.mxu0
      %v1323 = vadd.f32 0.0, %v1322
      %v1324 = vpop.f32.mrf.mxu0
      %v1325 = vadd.f32 0.0, %v1324
      %v1326 = vpop.f32.mrf.mxu0
      %v1327 = vpop.f32.mrf.mxu0
      %1328 = vdwg.mxu0
      %1329 = vmatprep.subr.bf16.mxu0 0
      %1330 = vmatpush1.bf16.msra.mxu0 0
      %1331 = vmatprep.subr.bf16.mxu0 0
      %1332 = vmatpush1.bf16.msra.mxu0 0
      %1333 = vmatprep.subr.bf16.mxu0 0
      %1334 = vmatpush1.bf16.msra.mxu0 0
      %1335 = vmatprep.subr.bf16.mxu0 0
      %1336 = vmatpush1.bf16.msra.mxu0 0
      %1337 = vmatprep.subr.bf16.mxu0 0
      %1338 = vmatpush1.bf16.msra.mxu0 0
      %1339 = vmatprep.subr.bf16.mxu0 0
      %1340 = vmatpush1.bf16.msra.mxu0 0
      %1341 = vmatprep.subr.bf16.mxu0 0
      %1342 = vmatpush1.bf16.msra.mxu0 0
      %1343 = vmatprep.subr.bf16.mxu0 0
      %1344 = vmatpush1.bf16.msra.mxu0 %v1286
      %1345 = vmatprep.subr.bf16.mxu0 0
      %1346 = vmatpush2.bf16.msra.mxu0 0
      %1347 = vmatprep.subr.bf16.mxu0 0
      %1348 = vmatpush2.bf16.msra.mxu0 0
      %1349 = vmatprep.subr.bf16.mxu0 0
      %1350 = vmatpush2.bf16.msra.mxu0 0
      %1351 = vmatprep.subr.bf16.mxu0 0
      %1352 = vmatpush2.bf16.msra.mxu0 0
      %1353 = vmatprep.subr.bf16.mxu0 0
      %1354 = vmatpush2.bf16.msra.mxu0 0
      %1355 = vmatprep.subr.bf16.mxu0 0
      %1356 = vmatpush2.bf16.msra.mxu0 0
      %1357 = vmatprep.subr.bf16.mxu0 0
      %1358 = vmatpush2.bf16.msra.mxu0 0
      %1359 = vmatprep.subr.bf16.mxu0 0
      %1360 = vmatpush2.bf16.msra.mxu0 0
      %1361 = vmatprep.mubr.bf16.mxu0 0
      %1362 = vmatmul.mubr.bf16.gmra.mxu0 %v1277
      %v1363 = vpop.f32.mrf.mxu0
      %v1364 = vadd.f32 0.0, %v1363
      %v1365 = vpop.f32.mrf.mxu0
      %v1366 = vpop.f32.mrf.mxu0
      %v1367 = vpop.f32.mrf.mxu0
      %1368 = vdwg.mxu0
      %v1369 = vadd.f32 %v1246, %v1323
      %v1370 = vadd.f32 %v1247, %v1325
      %v1371 = vadd.f32 %v1248, %v1364
      %1373 = vset.pattern.permute.xlu0 0
      %1374 = vperm.xlu0 %1373, %v289
      %v1375 = vpop.permute.xlu0 %1374
      %v1377 = vadd.f32 %v1369, %v1375
      %v1378 = vadd.f32 %v1370, %v1375
      %v1379 = vadd.f32 %v1371, %v1375
      %v1380 = vmax.f32 %v1377, 0.0
      %v1381 = vmax.f32 %v1378, 0.0
      %v1382 = vmax.f32 %v1379, 0.0
      %v1383 = vpack.c.bf16 %v1380, %v1380
      %v1384 = vpack.c.bf16 %v1381, %v1381
      %v1385 = vpack.c.bf16 %v1382, %v1382
      %1387 = vset.pattern.permute.xlu0 0
      %1388 = vperm.xlu0 %1387, %v291
      %v1389 = vpop.permute.xlu0 %1388
      %vm1391 = vcmask 64512
      %v1393 = vsel %vm1391, %v290, 0
      %vm1395 = vcmask 1043456
      %v1397 = vsel %vm1395, %v1383, 0
      %v1400 = vsel %vm1395, %v1384, 0
      %v1403 = vsel %vm1395, %v1385, 0
      %1405 = vmatprep.subr.bf16.mxu0 0
      %1406 = vmatpush1.bf16.msra.mxu0 0
      %1407 = vmatprep.subr.bf16.mxu0 0
      %1408 = vmatpush1.bf16.msra.mxu0 0
      %1409 = vmatprep.subr.bf16.mxu0 0
      %1410 = vmatpush1.bf16.msra.mxu0 0
      %1411 = vmatprep.subr.bf16.mxu0 0
      %1412 = vmatpush1.bf16.msra.mxu0 0
      %1413 = vmatprep.subr.bf16.mxu0 0
      %1414 = vmatpush1.bf16.msra.mxu0 0
      %1415 = vmatprep.subr.bf16.mxu0 0
      %1416 = vmatpush1.bf16.msra.mxu0 0
      %1417 = vmatprep.subr.bf16.mxu0 0
      %1418 = vmatpush1.bf16.msra.mxu0 0
      %1419 = vmatprep.subr.bf16.mxu0 %v1400
      %1420 = vmatpush1.bf16.msra.mxu0 %v1397
      %1421 = vmatprep.subr.bf16.mxu0 0
      %1422 = vmatpush2.bf16.msra.mxu0 0
      %1423 = vmatprep.subr.bf16.mxu0 0
      %1424 = vmatpush2.bf16.msra.mxu0 0
      %1425 = vmatprep.subr.bf16.mxu0 0
      %1426 = vmatpush2.bf16.msra.mxu0 0
      %1427 = vmatprep.subr.bf16.mxu0 0
      %1428 = vmatpush2.bf16.msra.mxu0 0
      %1429 = vmatprep.subr.bf16.mxu0 0
      %1430 = vmatpush2.bf16.msra.mxu0 0
      %1431 = vmatprep.subr.bf16.mxu0 0
      %1432 = vmatpush2.bf16.msra.mxu0 0
      %1433 = vmatprep.subr.bf16.mxu0 0
      %1434 = vmatpush2.bf16.msra.mxu0 0
      %1435 = vmatprep.subr.bf16.mxu0 0
      %1436 = vmatpush2.bf16.msra.mxu0 0
      %1437 = vmatprep.mubr.bf16.mxu0 0
      %1438 = vmatmul.mubr.bf16.gmra.mxu0 %v1393
      %v1439 = vpop.f32.mrf.mxu0
      %v1440 = vadd.f32 %v1389, %v1439
      %v1441 = vpop.f32.mrf.mxu0
      %v1442 = vadd.f32 %v1389, %v1441
      %v1443 = vpop.f32.mrf.mxu0
      %v1444 = vpop.f32.mrf.mxu0
      %1445 = vdwg.mxu0
      %1446 = vmatprep.subr.bf16.mxu0 0
      %1447 = vmatpush1.bf16.msra.mxu0 0
      %1448 = vmatprep.subr.bf16.mxu0 0
      %1449 = vmatpush1.bf16.msra.mxu0 0
      %1450 = vmatprep.subr.bf16.mxu0 0
      %1451 = vmatpush1.bf16.msra.mxu0 0
      %1452 = vmatprep.subr.bf16.mxu0 0
      %1453 = vmatpush1.bf16.msra.mxu0 0
      %1454 = vmatprep.subr.bf16.mxu0 0
      %1455 = vmatpush1.bf16.msra.mxu0 0
      %1456 = vmatprep.subr.bf16.mxu0 0
      %1457 = vmatpush1.bf16.msra.mxu0 0
      %1458 = vmatprep.subr.bf16.mxu0 0
      %1459 = vmatpush1.bf16.msra.mxu0 0
      %1460 = vmatprep.subr.bf16.mxu0 0
      %1461 = vmatpush1.bf16.msra.mxu0 %v1403
      %1462 = vmatprep.subr.bf16.mxu0 0
      %1463 = vmatpush2.bf16.msra.mxu0 0
      %1464 = vmatprep.subr.bf16.mxu0 0
      %1465 = vmatpush2.bf16.msra.mxu0 0
      %1466 = vmatprep.subr.bf16.mxu0 0
      %1467 = vmatpush2.bf16.msra.mxu0 0
      %1468 = vmatprep.subr.bf16.mxu0 0
      %1469 = vmatpush2.bf16.msra.mxu0 0
      %1470 = vmatprep.subr.bf16.mxu0 0
      %1471 = vmatpush2.bf16.msra.mxu0 0
      %1472 = vmatprep.subr.bf16.mxu0 0
      %1473 = vmatpush2.bf16.msra.mxu0 0
      %1474 = vmatprep.subr.bf16.mxu0 0
      %1475 = vmatpush2.bf16.msra.mxu0 0
      %1476 = vmatprep.subr.bf16.mxu0 0
      %1477 = vmatpush2.bf16.msra.mxu0 0
      %1478 = vmatprep.mubr.bf16.mxu0 0
      %1479 = vmatmul.mubr.bf16.gmra.mxu0 %v1393
      %v1480 = vpop.f32.mrf.mxu0
      %v1481 = vadd.f32 %v1389, %v1480
      %v1482 = vpop.f32.mrf.mxu0
      %v1483 = vpop.f32.mrf.mxu0
      %v1484 = vpop.f32.mrf.mxu0
      %1485 = vdwg.mxu0
      %v1486 = vmax.f32 %v1440, 0.0
      %v1487 = vmax.f32 %v1442, 0.0
      %v1488 = vmax.f32 %v1481, 0.0
      %v1489 = vpack.c.bf16 %v1486, %v1486
      %v1490 = vpack.c.bf16 %v1487, %v1487
      %v1491 = vpack.c.bf16 %v1488, %v1488
      %1493 = vset.pattern.permute.xlu0 0
      %1494 = vperm.xlu0 %1493, %v294
      %v1495 = vpop.permute.xlu0 %1494
      %1498 = vset.pattern.permute.xlu0 0
      %1499 = vperm.xlu0 %1498, %v295
      %v1500 = vpop.permute.xlu0 %1499
      %v1504 = vunpack.c.l.b16 %v292
      %v1505 = vunpack.c.l.b16 %v293
      %v1506 = vpack.c.b16 %v1505, %v1504
      %v1508 = vsel %vm1391, %v1506, 0
      %v1511 = vsel %vm1395, %v1489, 0
      %v1514 = vsel %vm1395, %v1490, 0
      %v1517 = vsel %vm1395, %v1491, 0
      %1519 = vmatprep.subr.bf16.mxu0 0
      %1520 = vmatpush1.bf16.msra.mxu0 0
      %1521 = vmatprep.subr.bf16.mxu0 0
      %1522 = vmatpush1.bf16.msra.mxu0 0
      %1523 = vmatprep.subr.bf16.mxu0 0
      %1524 = vmatpush1.bf16.msra.mxu0 0
      %1525 = vmatprep.subr.bf16.mxu0 0
      %1526 = vmatpush1.bf16.msra.mxu0 0
      %1527 = vmatprep.subr.bf16.mxu0 0
      %1528 = vmatpush1.bf16.msra.mxu0 0
      %1529 = vmatprep.subr.bf16.mxu0 0
      %1530 = vmatpush1.bf16.msra.mxu0 0
      %1531 = vmatprep.subr.bf16.mxu0 0
      %1532 = vmatpush1.bf16.msra.mxu0 0
      %1533 = vmatprep.subr.bf16.mxu0 %v1514
      %1534 = vmatpush1.bf16.msra.mxu0 %v1511
      %1535 = vmatprep.subr.bf16.mxu0 0
      %1536 = vmatpush2.bf16.msra.mxu0 0
      %1537 = vmatprep.subr.bf16.mxu0 0
      %1538 = vmatpush2.bf16.msra.mxu0 0
      %1539 = vmatprep.subr.bf16.mxu0 0
      %1540 = vmatpush2.bf16.msra.mxu0 0
      %1541 = vmatprep.subr.bf16.mxu0 0
      %1542 = vmatpush2.bf16.msra.mxu0 0
      %1543 = vmatprep.subr.bf16.mxu0 0
      %1544 = vmatpush2.bf16.msra.mxu0 0
      %1545 = vmatprep.subr.bf16.mxu0 0
      %1546 = vmatpush2.bf16.msra.mxu0 0
      %1547 = vmatprep.subr.bf16.mxu0 0
      %1548 = vmatpush2.bf16.msra.mxu0 0
      %1549 = vmatprep.subr.bf16.mxu0 0
      %1550 = vmatpush2.bf16.msra.mxu0 0
      %1551 = vmatprep.mubr.bf16.mxu0 0
      %1552 = vmatmul.mubr.bf16.gmra.mxu0 %v1508
      %v1553 = vpop.f32.mrf.mxu0
      %v1554 = vadd.f32 %v1495, %v1553
      %v1555 = vpop.f32.mrf.mxu0
      %v1556 = vadd.f32 %v1495, %v1555
      %v1557 = vpop.f32.mrf.mxu0
      %v1558 = vadd.f32 %v1500, %v1557
      %v1559 = vpop.f32.mrf.mxu0
      %v1560 = vadd.f32 %v1500, %v1559
      %1561 = vdwg.mxu0
      %1562 = vmatprep.subr.bf16.mxu0 0
      %1563 = vmatpush1.bf16.msra.mxu0 0
      %1564 = vmatprep.subr.bf16.mxu0 0
      %1565 = vmatpush1.bf16.msra.mxu0 0
      %1566 = vmatprep.subr.bf16.mxu0 0
      %1567 = vmatpush1.bf16.msra.mxu0 0
      %1568 = vmatprep.subr.bf16.mxu0 0
      %1569 = vmatpush1.bf16.msra.mxu0 0
      %1570 = vmatprep.subr.bf16.mxu0 0
      %1571 = vmatpush1.bf16.msra.mxu0 0
      %1572 = vmatprep.subr.bf16.mxu0 0
      %1573 = vmatpush1.bf16.msra.mxu0 0
      %1574 = vmatprep.subr.bf16.mxu0 0
      %1575 = vmatpush1.bf16.msra.mxu0 0
      %1576 = vmatprep.subr.bf16.mxu0 0
      %1577 = vmatpush1.bf16.msra.mxu0 %v1517
      %1578 = vmatprep.subr.bf16.mxu0 0
      %1579 = vmatpush2.bf16.msra.mxu0 0
      %1580 = vmatprep.subr.bf16.mxu0 0
      %1581 = vmatpush2.bf16.msra.mxu0 0
      %1582 = vmatprep.subr.bf16.mxu0 0
      %1583 = vmatpush2.bf16.msra.mxu0 0
      %1584 = vmatprep.subr.bf16.mxu0 0
      %1585 = vmatpush2.bf16.msra.mxu0 0
      %1586 = vmatprep.subr.bf16.mxu0 0
      %1587 = vmatpush2.bf16.msra.mxu0 0
      %1588 = vmatprep.subr.bf16.mxu0 0
      %1589 = vmatpush2.bf16.msra.mxu0 0
      %1590 = vmatprep.subr.bf16.mxu0 0
      %1591 = vmatpush2.bf16.msra.mxu0 0
      %1592 = vmatprep.subr.bf16.mxu0 0
      %1593 = vmatpush2.bf16.msra.mxu0 0
      %1594 = vmatprep.mubr.bf16.mxu0 0
      %1595 = vmatmul.mubr.bf16.gmra.mxu0 %v1508
      %v1596 = vpop.f32.mrf.mxu0
      %v1597 = vadd.f32 %v1495, %v1596
      %v1598 = vpop.f32.mrf.mxu0
      %v1599 = vpop.f32.mrf.mxu0
      %v1600 = vadd.f32 %v1500, %v1599
      %v1601 = vpop.f32.mrf.mxu0
      %1602 = vdwg.mxu0
      %v1603 = vmax.f32 %v1554, 0.0
      %v1604 = vmax.f32 %v1556, 0.0
      %v1605 = vmax.f32 %v1597, 0.0
      %v1606 = vmax.f32 %v1558, 0.0
      %v1607 = vmax.f32 %v1560, 0.0
      %v1608 = vmax.f32 %v1600, 0.0
      %1609 = vst [vmem:[%s278] sm:$0xff] %v1603
      %1610 = vst [vmem:[%s278 + $0x8] sm:$0xff] %v1604
      %vm1611 = vcmask 261120
      %1612 = vst.msk [vmem:[%s278 + $0x10] sm:$0xff] %vm1611, %v1605
      %1613 = vst [vmem:[%s278 + $0x18] sm:$0xff] %v1606
      %1614 = vst [vmem:[%s278 + $0x20] sm:$0xff] %v1607
      %1615 = vst.msk [vmem:[%s278 + $0x28] sm:$0xff] %vm1611, %v1608
      %p1616 = scmp.lt.s32.totalorder %s18, 1
      %s1617 = scalar_select %p1616, %s18, 1
      %s1618 = smul.addr %s1617, 6
      %s1619 = smul.addr %s1618, 8
      %s1620 = scalar_lea.vmem %s7, %s1619
      // Predicated region
      $region49: #{mlpconv2d_forward.1} parent=47 // pred_check
        %p1621 = pneg %p188
      $region50: #{mlpconv2d_forward.1} parent=47 // pred_check_branch
        %1623 = sbr.rel (%p1621) target = $region52
      $region51: #{mlpconv2d_forward.1} parent=47 // pred_region
        _
      $region52: #{mlpconv2d_forward.1} parent=47 // pred_fallthru
        _
    $region48: #{mlpconv2d_forward.1} parent=5 // pred_fallthru
      _
    %p1624 = scmp.le.s32.totalorder 2, %s13
    // Predicated region
    $region53: #{mlpconv2d_forward.1} parent=5 // pred_check
      %p1625 = pneg %p1624
    $region54: #{mlpconv2d_forward.1} parent=5 // pred_check_branch
      %1627 = sbr.rel (%p1625) target = $region56
    $region55: #{mlpconv2d_forward.1} parent=5 // pred_region
      %s1628 = ssub.s32 %s13, 2
      // Predicated region
      $region57: #{mlpconv2d_forward.1} parent=55 // pred_check
        %p1629 = pneg %p194
      $region58: #{mlpconv2d_forward.1} parent=55 // pred_check_branch
        %1631 = sbr.rel (%p1629) target = $region60
      $region59: #{mlpconv2d_forward.1} parent=55 // pred_region
        %p1632 = scmp.lt.s32.totalorder %s19, 1
        %s1633 = scalar_select %p1632, %s19, 1
        %s1634 = smul.addr %s1633, 6
        %s1635 = smul.addr %s1634, 8
        %s1636 = scalar_lea.vmem %s7, %s1635
      $region60: #{mlpconv2d_forward.1} parent=55 // pred_fallthru
        _
    $region56: #{mlpconv2d_forward.1} parent=5 // pred_fallthru
      _
  $region6: #{mlpconv2d_forward.1} parent=0 // loop_footer
    %s17 = sadd.s32 1, %s13
  $region7: #{mlpconv2d_forward.1} parent=0 // loop_footer_branch
    %12 = sbr.rel target = $region3
  $region8: #{mlpconv2d_forward.1} parent=0 // loop_exit
    _

</llo_original>
